<compile_context>
chip_gen: v6e
topology: v6e:2x2x1
jax: 0.10.0
libtpu: 0.0.40
codegen_flags: <defaults>
</compile_context>

<pallas_src>
import functools
import math

import jax
import jax.numpy as jnp
from jax import lax
from jax.experimental import pallas as pl
from jax.experimental.pallas import tpu as pltpu


def _layer_norm(x, gamma, beta, eps=1e-6):
    # PyTorch nn.LayerNorm(d_model, eps=1e-6): biased variance over the last axis.
    mean = jnp.mean(x, axis=-1, keepdims=True)
    var = jnp.mean((x - mean) ** 2, axis=-1, keepdims=True)
    return (x - mean) * lax.rsqrt(var + eps) * gamma + beta


def _encoder_body(n_head, d_k, d_v,
                  x_ref, mask_bias_ref,
                  wq_ref, bq_ref, wk_ref, bk_ref, wv_ref, bv_ref,
                  wfc_ref, bfc_ref, ln1_g_ref, ln1_b_ref,
                  w1_ref, b1_ref, w2_ref, b2_ref,
                  ln2_g_ref, ln2_b_ref,
                  out_ref):
    Bt, L, D = x_ref.shape
    H = n_head
    G = H * Bt

    x = x_ref[...].astype(jnp.float32)          # (Bt, L, D)
    x2 = x.reshape(Bt * L, D)                   # tokens on the sublane axis (b-major)
    xb = x2.astype(jnp.bfloat16)

    # ---- Q/K/V projections: three wide matmuls (contraction = d_model) --------------
    # 1/sqrt(d_k) is already folded into wq/bq on the host.
    q = jnp.dot(xb, wq_ref[...], preferred_element_type=jnp.float32) + bq_ref[...]
    k = jnp.dot(xb, wk_ref[...], preferred_element_type=jnp.float32) + bk_ref[...]
    v = jnp.dot(xb, wv_ref[...], preferred_element_type=jnp.float32) + bv_ref[...]

    def to_heads(t, d):
        # (Bt*L, H*d) -> head-major stack (H*Bt, L, d).
        # H static lane-slices over the whole block + one stack; leading-dim reshapes
        # are free (L % 8 == 0 keeps sublane tiles intact).
        t3 = t.reshape(Bt, L, H * d)
        th = jnp.stack([t3[:, :, h * d:(h + 1) * d] for h in range(H)], axis=0)
        return th.reshape(G, L, d)

    qg = to_heads(q, d_k).astype(jnp.bfloat16)
    kg = to_heads(k, d_k).astype(jnp.bfloat16)
    vg = to_heads(v, d_v).astype(jnp.bfloat16)

    # scores: single batched dot_general over G = H*Bt
    s = jnp.einsum('gqd,gkd->gqk', qg, kg,
                   preferred_element_type=jnp.float32)        # (G, L, L) f32

    if mask_bias_ref is not None:
        # additive bias (0 / -1e9), broadcast over the head axis (leading dim).
        bias = mask_bias_ref[...].astype(jnp.float32)          # (Bt, L, L)
        s = (s.reshape(H, Bt, L, L) + bias[None]).reshape(G, L, L)

    # softmax over keys, in f32; denominator via approx reciprocal on the EUP.
    s = s - jnp.max(s, axis=-1, keepdims=True)
    p = jnp.exp(s)
    p = p * pl.reciprocal(jnp.sum(p, axis=-1, keepdims=True), approx=True)

    o = jnp.einsum('gqk,gkd->gqd', p.astype(jnp.bfloat16), vg,
                   preferred_element_type=jnp.float32)         # (G, L, d_v)

    # ---- output projection: one batched-over-heads matmul + head reduction ----------
    # sum_h O_h @ Wfc[h]  ==  concat_h(O_h) @ Wfc (no lane regroup needed).
    ob = o.reshape(H, Bt * L, d_v).astype(jnp.bfloat16)        # major-dim reshape (free)
    attn = jnp.sum(
        jnp.einsum('hnd,hdm->hnm', ob, wfc_ref[...],
                   preferred_element_type=jnp.float32),
        axis=0) + bfc_ref[...]                                 # (Bt*L, D)

    # dropout -> identity (eval); residual + LayerNorm in f32
    y1 = _layer_norm(attn + x2, ln1_g_ref[...], ln1_b_ref[...])

    # ---- PositionwiseFeedForward -----------------------------------------------------
    # bias+ReLU fused, cast to bf16 immediately so only the bf16 hidden stays live.
    h1 = jnp.maximum(
        jnp.dot(y1.astype(jnp.bfloat16), w1_ref[...],
                preferred_element_type=jnp.float32) + b1_ref[...],
        0.0).astype(jnp.bfloat16)
    h2 = jnp.dot(h1, w2_ref[...], preferred_element_type=jnp.float32) + b2_ref[...]
    # dropout -> identity (eval); residual + LayerNorm in f32
    y2 = _layer_norm(h2 + y1, ln2_g_ref[...], ln2_b_ref[...])

    out_ref[...] = y2.reshape(Bt, L, D).astype(out_ref.dtype)


def _kernel_no_mask(n_head, d_k, d_v, x_ref, *rest):
    *w_refs, out_ref = rest
    _encoder_body(n_head, d_k, d_v, x_ref, None, *w_refs, out_ref)


def _kernel_with_mask(n_head, d_k, d_v, x_ref, mask_ref, *rest):
    *w_refs, out_ref = rest
    _encoder_body(n_head, d_k, d_v, x_ref, mask_ref, *w_refs, out_ref)


def _resident_spec(a):
    # Full-array block with a constant index map: stays resident in VMEM for all steps.
    if a.ndim == 2:
        return pl.BlockSpec(a.shape, lambda b: (0, 0))
    return pl.BlockSpec(a.shape, lambda b: (0, 0, 0))


def _prepare_operands(params, n_head, d_k, d_v):
    bf16 = jnp.bfloat16
    inv_temp = 1.0 / math.sqrt(d_k)
    # Matmul weights -> bf16 (MXU-native, halves HBM/VMEM bytes); biases & LN params f32.
    # The 1/sqrt(d_k) attention scale is folded into wq / bq here (post-bias scaling of q
    # equals pre-scaling both the weight and the bias).
    return [
        (params["wq"] * inv_temp).astype(bf16), params["bq"] * inv_temp,
        params["wk"].astype(bf16), params["bk"],
        params["wv"].astype(bf16), params["bv"],
        params["wfc"].astype(bf16).reshape(n_head, d_v, -1), params["bfc"],
        params["ln1_g"], params["ln1_b"],
        params["w1"].astype(bf16), params["b1"],
        params["w2"].astype(bf16), params["b2"],
        params["ln2_g"], params["ln2_b"],
    ]


def _vmem_limit_bytes():
    # ~75% of physical VMEM, capped at 100 MiB: ~48 MiB on v7x (64 MiB VMEM),
    # ~96 MiB on v5e/v6e (128 MiB VMEM).  Falls back to a safe default off-TPU.
    try:
        cap = pltpu.get_tpu_info().vmem_capacity_bytes
    except Exception:
        cap = 64 * 1024 * 1024
    return int(max(32 * 1024 * 1024, min(cap * 3 // 4, 100 * 1024 * 1024)))


def _auto_block_b(B, L, target_rows=256, min_steps=4):
    # Grow block_b until each step's dense matmuls see ~256 rows (fills the v7x 256x256
    # MXU M dim; 128 already saturates v5e/v6e), but keep >= min_steps grid steps when
    # the batch allows (>= 2 steps per TensorCore keeps the DMA pipeline overlapped).
    best = 1
    for cand in range(1, B + 1):
        if B % cand:
            continue
        if B // cand < min(min_steps, B):
            break
        best = cand
        if cand * L >= target_rows:
            break
    return best


def encoder_layer(x, params, mask=None, *, n_head, d_k, d_v, block_b=None):
    B, L, D = x.shape
    if block_b is None:
        block_b = _auto_block_b(B, L)
    assert B % block_b == 0, "block_b must divide the batch size"
    assert L % 8 == 0, "sequence length should be a multiple of 8 (sublane tile)"
    n_blocks = B // block_b

    operands = [x]
    in_specs = [pl.BlockSpec((block_b, L, D), lambda b: (b, 0, 0))]
    if mask is not None:
        # Host-side conversion to an additive bf16 bias (0 where kept, -1e9 where masked):
        # halves the per-step mask DMA and turns the in-kernel compare+select into an add.
        mask_bias = jnp.where(mask == 0, jnp.float32(-1e9),
                              jnp.float32(0.0)).astype(jnp.bfloat16)
        operands.append(mask_bias)
        in_specs.append(pl.BlockSpec((block_b, L, L), lambda b: (b, 0, 0)))
        kernel = functools.partial(_kernel_with_mask, n_head, d_k, d_v)
    else:
        kernel = functools.partial(_kernel_no_mask, n_head, d_k, d_v)

    weights = _prepare_operands(params, n_head, d_k, d_v)
    operands += weights
    in_specs += [_resident_spec(a) for a in weights]

    # NOTE: for real configs keep d_model a multiple of 128 (lane-dense output stores) and
    # consider a bf16 output dtype if the consumer allows (halves writeback bytes).
    return pl.pallas_call(
        kernel,
        out_shape=jax.ShapeDtypeStruct((B, L, D), x.dtype),
        grid_spec=pltpu.PrefetchScalarGridSpec(
            num_scalar_prefetch=0,
            grid=(n_blocks,),
            in_specs=in_specs,
            out_specs=pl.BlockSpec((block_b, L, D), lambda b: (b, 0, 0)),
        ),
        compiler_params=pltpu.CompilerParams(
            dimension_semantics=("parallel",),        # batch blocks -> both v7x TCs
            vmem_limit_bytes=_vmem_limit_bytes(),
        ),
    )(*operands)


def init_params(key, d_model, d_inner, n_head, d_k, d_v):
    ks = jax.random.split(key, 6)
    scale = 0.05
    return {
        "wq": scale * jax.random.normal(ks[0], (d_model, n_head * d_k), jnp.float32),
        "bq": jnp.zeros((1, n_head * d_k), jnp.float32),
        "wk": scale * jax.random.normal(ks[1], (d_model, n_head * d_k), jnp.float32),
        "bk": jnp.zeros((1, n_head * d_k), jnp.float32),
        "wv": scale * jax.random.normal(ks[2], (d_model, n_head * d_v), jnp.float32),
        "bv": jnp.zeros((1, n_head * d_v), jnp.float32),
        "wfc": scale * jax.random.normal(ks[3], (n_head * d_v, d_model), jnp.float32),
        "bfc": jnp.zeros((1, d_model), jnp.float32),
        "ln1_g": jnp.ones((1, d_model), jnp.float32),
        "ln1_b": jnp.zeros((1, d_model), jnp.float32),
        "w1": scale * jax.random.normal(ks[4], (d_model, d_inner), jnp.float32),
        "b1": jnp.zeros((1, d_inner), jnp.float32),
        "w2": scale * jax.random.normal(ks[5], (d_inner, d_model), jnp.float32),
        "b2": jnp.zeros((1, d_model), jnp.float32),
        "ln2_g": jnp.ones((1, d_model), jnp.float32),
        "ln2_b": jnp.zeros((1, d_model), jnp.float32),
    }


def reference_encoder_layer(x, p, mask=None, *, n_head, d_k, d_v):
    # Pure-JAX f32 mirror of the PyTorch forward (eval mode) for validation.
    B, L, D = x.shape
    q = (x @ p["wq"] + p["bq"]).reshape(B, L, n_head, d_k).transpose(0, 2, 1, 3)
    k = (x @ p["wk"] + p["bk"]).reshape(B, L, n_head, d_k).transpose(0, 2, 1, 3)
    v = (x @ p["wv"] + p["bv"]).reshape(B, L, n_head, d_v).transpose(0, 2, 1, 3)
    s = jnp.einsum("bhqd,bhkd->bhqk", q / math.sqrt(d_k), k)
    if mask is not None:
        s = jnp.where(mask[:, None, :, :] == 0, -1e9, s)
    a = jax.nn.softmax(s, axis=-1)
    o = jnp.einsum("bhqk,bhkd->bhqd", a, v).transpose(0, 2, 1, 3).reshape(B, L, -1)
    o = o @ p["wfc"] + p["bfc"]
    o = _layer_norm(o + x, p["ln1_g"], p["ln1_b"])
    h = jnp.maximum(o @ p["w1"] + p["b1"], 0.0) @ p["w2"] + p["b2"]
    return _layer_norm(h + o, p["ln2_g"], p["ln2_b"])


if __name__ == "__main__":
    B, L = 4, 16
    d_model, d_inner, n_head, d_k, d_v = 32, 64, 4, 8, 8

    key = jax.random.PRNGKey(0)
    kx, kp = jax.random.split(key)
    x = jax.random.normal(kx, (B, L, d_model), jnp.float32)
    params = init_params(kp, d_model, d_inner, n_head, d_k, d_v)

    # slf_attn_mask=None (module default): mask path skipped entirely at trace time.
    # block_b=2 exercises the multi-batch-per-step path.
    out = encoder_layer(x, params, mask=None,
                        n_head=n_head, d_k=d_k, d_v=d_v, block_b=2)
    out = jax.block_until_ready(out)
    ref = reference_encoder_layer(x, params, mask=None,
                                  n_head=n_head, d_k=d_k, d_v=d_v)
    assert out.shape == (B, L, d_model)
    # bf16 MXU inputs + approx reciprocal vs. an f32 reference -> loose tolerance.
    assert jnp.allclose(out, ref, rtol=2e-2, atol=2e-2), (
        "no-mask mismatch, max |diff| = %g" % float(jnp.max(jnp.abs(out - ref))))

    # Also exercise the explicit-mask path (causal mask) with auto block_b.
    causal = jnp.tril(jnp.ones((L, L), jnp.float32))
    mask = jnp.broadcast_to(causal, (B, L, L))
    out_m = encoder_layer(x, params, mask=mask,
                          n_head=n_head, d_k=d_k, d_v=d_v)
    out_m = jax.block_until_ready(out_m)
    ref_m = reference_encoder_layer(x, params, mask=mask,
                                    n_head=n_head, d_k=d_k, d_v=d_v)
    assert jnp.allclose(out_m, ref_m, rtol=2e-2, atol=2e-2), (
        "masked mismatch, max |diff| = %g" % float(jnp.max(jnp.abs(out_m - ref_m))))

    print("KERNEL_OK")
</pallas_src>

<mosaic_0001>
module attributes {stable_mosaic.version = 11 : i64} {
  func.func @_kernel_no_mask(%arg0: i32, %arg1: memref<2x16x32xf32, #tpu.memory_space<vmem>>, %arg2: memref<32x32xbf16, #tpu.memory_space<vmem>>, %arg3: memref<1x32xf32, #tpu.memory_space<vmem>>, %arg4: memref<32x32xbf16, #tpu.memory_space<vmem>>, %arg5: memref<1x32xf32, #tpu.memory_space<vmem>>, %arg6: memref<32x32xbf16, #tpu.memory_space<vmem>>, %arg7: memref<1x32xf32, #tpu.memory_space<vmem>>, %arg8: memref<4x8x32xbf16, #tpu.memory_space<vmem>>, %arg9: memref<1x32xf32, #tpu.memory_space<vmem>>, %arg10: memref<1x32xf32, #tpu.memory_space<vmem>>, %arg11: memref<1x32xf32, #tpu.memory_space<vmem>>, %arg12: memref<32x64xbf16, #tpu.memory_space<vmem>>, %arg13: memref<1x64xf32, #tpu.memory_space<vmem>>, %arg14: memref<64x32xbf16, #tpu.memory_space<vmem>>, %arg15: memref<1x32xf32, #tpu.memory_space<vmem>>, %arg16: memref<1x32xf32, #tpu.memory_space<vmem>>, %arg17: memref<1x32xf32, #tpu.memory_space<vmem>>, %arg18: memref<2x16x32xf32, #tpu.memory_space<vmem>>) attributes {dimension_semantics = [#tpu.dimension_semantics<parallel>], iteration_bounds = array<i64: 2>, scalar_prefetch = 0 : i64, scratch_operands = 0 : i64, tpu.core_type = #tpu.core_type<tc>, window_params = [{transform_indices = @transform_0, window_bounds = array<i64: 2, 16, 32>}, {pipeline_mode = #tpu.pipeline_mode<synchronous>, transform_indices = @transform_1, window_bounds = array<i64: 32, 32>}, {pipeline_mode = #tpu.pipeline_mode<synchronous>, transform_indices = @transform_2, window_bounds = array<i64: 1, 32>}, {pipeline_mode = #tpu.pipeline_mode<synchronous>, transform_indices = @transform_3, window_bounds = array<i64: 32, 32>}, {pipeline_mode = #tpu.pipeline_mode<synchronous>, transform_indices = @transform_4, window_bounds = array<i64: 1, 32>}, {pipeline_mode = #tpu.pipeline_mode<synchronous>, transform_indices = @transform_5, window_bounds = array<i64: 32, 32>}, {pipeline_mode = #tpu.pipeline_mode<synchronous>, transform_indices = @transform_6, window_bounds = array<i64: 1, 32>}, {pipeline_mode = #tpu.pipeline_mode<synchronous>, transform_indices = @transform_7, window_bounds = array<i64: 4, 8, 32>}, {pipeline_mode = #tpu.pipeline_mode<synchronous>, transform_indices = @transform_8, window_bounds = array<i64: 1, 32>}, {pipeline_mode = #tpu.pipeline_mode<synchronous>, transform_indices = @transform_9, window_bounds = array<i64: 1, 32>}, {pipeline_mode = #tpu.pipeline_mode<synchronous>, transform_indices = @transform_10, window_bounds = array<i64: 1, 32>}, {pipeline_mode = #tpu.pipeline_mode<synchronous>, transform_indices = @transform_11, window_bounds = array<i64: 32, 64>}, {pipeline_mode = #tpu.pipeline_mode<synchronous>, transform_indices = @transform_12, window_bounds = array<i64: 1, 64>}, {pipeline_mode = #tpu.pipeline_mode<synchronous>, transform_indices = @transform_13, window_bounds = array<i64: 64, 32>}, {pipeline_mode = #tpu.pipeline_mode<synchronous>, transform_indices = @transform_14, window_bounds = array<i64: 1, 32>}, {pipeline_mode = #tpu.pipeline_mode<synchronous>, transform_indices = @transform_15, window_bounds = array<i64: 1, 32>}, {pipeline_mode = #tpu.pipeline_mode<synchronous>, transform_indices = @transform_16, window_bounds = array<i64: 1, 32>}, {transform_indices = @transform_17, window_bounds = array<i64: 2, 16, 32>}]} {
    %c0 = arith.constant 0 : index
    %c0_0 = arith.constant 0 : index
    %c0_1 = arith.constant 0 : index
    %0 = vector.load %arg1[%c0, %c0_0, %c0_1] : memref<2x16x32xf32, #tpu.memory_space<vmem>>, vector<2x16x32xf32>
    %1 = vector.shape_cast %0 : vector<2x16x32xf32> to vector<32x32xf32>
    %2 = arith.truncf %1 : vector<32x32xf32> to vector<32x32xbf16>
    %c0_2 = arith.constant 0 : index
    %c0_3 = arith.constant 0 : index
    %3 = vector.load %arg2[%c0_2, %c0_3] : memref<32x32xbf16, #tpu.memory_space<vmem>>, vector<32x32xbf16>
    %cst = arith.constant dense<0.000000e+00> : vector<32x32xf32>
    %4 = tpu.matmul %2, %3, %cst {dimension_numbers = #tpu.dot_dimension_numbers<[1], [0], [0], [1], [0, 0, 1, 1], [], []>} : vector<32x32xbf16>, vector<32x32xbf16>, vector<32x32xf32> -> vector<32x32xf32>
    %c0_4 = arith.constant 0 : index
    %c0_5 = arith.constant 0 : index
    %5 = vector.load %arg3[%c0_4, %c0_5] : memref<1x32xf32, #tpu.memory_space<vmem>>, vector<1x32xf32>
    %6 = vector.broadcast %5 : vector<1x32xf32> to vector<32x32xf32>
    %7 = arith.addf %4, %6 : vector<32x32xf32>
    %c0_6 = arith.constant 0 : index
    %c0_7 = arith.constant 0 : index
    %8 = vector.load %arg4[%c0_6, %c0_7] : memref<32x32xbf16, #tpu.memory_space<vmem>>, vector<32x32xbf16>
    %cst_8 = arith.constant dense<0.000000e+00> : vector<32x32xf32>
    %9 = tpu.matmul %2, %8, %cst_8 {dimension_numbers = #tpu.dot_dimension_numbers<[1], [0], [0], [1], [0, 0, 1, 1], [], []>} : vector<32x32xbf16>, vector<32x32xbf16>, vector<32x32xf32> -> vector<32x32xf32>
    %c0_9 = arith.constant 0 : index
    %c0_10 = arith.constant 0 : index
    %10 = vector.load %arg5[%c0_9, %c0_10] : memref<1x32xf32, #tpu.memory_space<vmem>>, vector<1x32xf32>
    %11 = vector.broadcast %10 : vector<1x32xf32> to vector<32x32xf32>
    %12 = arith.addf %9, %11 : vector<32x32xf32>
    %c0_11 = arith.constant 0 : index
    %c0_12 = arith.constant 0 : index
    %13 = vector.load %arg6[%c0_11, %c0_12] : memref<32x32xbf16, #tpu.memory_space<vmem>>, vector<32x32xbf16>
    %cst_13 = arith.constant dense<0.000000e+00> : vector<32x32xf32>
    %14 = tpu.matmul %2, %13, %cst_13 {dimension_numbers = #tpu.dot_dimension_numbers<[1], [0], [0], [1], [0, 0, 1, 1], [], []>} : vector<32x32xbf16>, vector<32x32xbf16>, vector<32x32xf32> -> vector<32x32xf32>
    %c0_14 = arith.constant 0 : index
    %c0_15 = arith.constant 0 : index
    %15 = vector.load %arg7[%c0_14, %c0_15] : memref<1x32xf32, #tpu.memory_space<vmem>>, vector<1x32xf32>
    %16 = vector.broadcast %15 : vector<1x32xf32> to vector<32x32xf32>
    %17 = arith.addf %14, %16 : vector<32x32xf32>
    %18 = vector.shape_cast %7 : vector<32x32xf32> to vector<2x16x32xf32>
    %19 = vector.extract_strided_slice %18 {offsets = [0, 0, 0], sizes = [2, 16, 8], strides = [1, 1, 1]} : vector<2x16x32xf32> to vector<2x16x8xf32>
    %20 = vector.extract_strided_slice %18 {offsets = [0, 0, 8], sizes = [2, 16, 8], strides = [1, 1, 1]} : vector<2x16x32xf32> to vector<2x16x8xf32>
    %21 = vector.extract_strided_slice %18 {offsets = [0, 0, 16], sizes = [2, 16, 8], strides = [1, 1, 1]} : vector<2x16x32xf32> to vector<2x16x8xf32>
    %22 = vector.extract_strided_slice %18 {offsets = [0, 0, 24], sizes = [2, 16, 8], strides = [1, 1, 1]} : vector<2x16x32xf32> to vector<2x16x8xf32>
    %23 = vector.shape_cast %19 : vector<2x16x8xf32> to vector<1x2x16x8xf32>
    %24 = vector.shape_cast %20 : vector<2x16x8xf32> to vector<1x2x16x8xf32>
    %25 = vector.shape_cast %21 : vector<2x16x8xf32> to vector<1x2x16x8xf32>
    %26 = vector.shape_cast %22 : vector<2x16x8xf32> to vector<1x2x16x8xf32>
    %27 = tpu.concatenate %23, %24, %25, %26 in 0 : vector<1x2x16x8xf32>, vector<1x2x16x8xf32>, vector<1x2x16x8xf32>, vector<1x2x16x8xf32> -> vector<4x2x16x8xf32>
    %28 = vector.shape_cast %27 : vector<4x2x16x8xf32> to vector<8x16x8xf32>
    %29 = arith.truncf %28 : vector<8x16x8xf32> to vector<8x16x8xbf16>
    %30 = vector.shape_cast %12 : vector<32x32xf32> to vector<2x16x32xf32>
    %31 = vector.extract_strided_slice %30 {offsets = [0, 0, 0], sizes = [2, 16, 8], strides = [1, 1, 1]} : vector<2x16x32xf32> to vector<2x16x8xf32>
    %32 = vector.extract_strided_slice %30 {offsets = [0, 0, 8], sizes = [2, 16, 8], strides = [1, 1, 1]} : vector<2x16x32xf32> to vector<2x16x8xf32>
    %33 = vector.extract_strided_slice %30 {offsets = [0, 0, 16], sizes = [2, 16, 8], strides = [1, 1, 1]} : vector<2x16x32xf32> to vector<2x16x8xf32>
    %34 = vector.extract_strided_slice %30 {offsets = [0, 0, 24], sizes = [2, 16, 8], strides = [1, 1, 1]} : vector<2x16x32xf32> to vector<2x16x8xf32>
    %35 = vector.shape_cast %31 : vector<2x16x8xf32> to vector<1x2x16x8xf32>
    %36 = vector.shape_cast %32 : vector<2x16x8xf32> to vector<1x2x16x8xf32>
    %37 = vector.shape_cast %33 : vector<2x16x8xf32> to vector<1x2x16x8xf32>
    %38 = vector.shape_cast %34 : vector<2x16x8xf32> to vector<1x2x16x8xf32>
    %39 = tpu.concatenate %35, %36, %37, %38 in 0 : vector<1x2x16x8xf32>, vector<1x2x16x8xf32>, vector<1x2x16x8xf32>, vector<1x2x16x8xf32> -> vector<4x2x16x8xf32>
    %40 = vector.shape_cast %39 : vector<4x2x16x8xf32> to vector<8x16x8xf32>
    %41 = arith.truncf %40 : vector<8x16x8xf32> to vector<8x16x8xbf16>
    %42 = vector.shape_cast %17 : vector<32x32xf32> to vector<2x16x32xf32>
    %43 = vector.extract_strided_slice %42 {offsets = [0, 0, 0], sizes = [2, 16, 8], strides = [1, 1, 1]} : vector<2x16x32xf32> to vector<2x16x8xf32>
    %44 = vector.extract_strided_slice %42 {offsets = [0, 0, 8], sizes = [2, 16, 8], strides = [1, 1, 1]} : vector<2x16x32xf32> to vector<2x16x8xf32>
    %45 = vector.extract_strided_slice %42 {offsets = [0, 0, 16], sizes = [2, 16, 8], strides = [1, 1, 1]} : vector<2x16x32xf32> to vector<2x16x8xf32>
    %46 = vector.extract_strided_slice %42 {offsets = [0, 0, 24], sizes = [2, 16, 8], strides = [1, 1, 1]} : vector<2x16x32xf32> to vector<2x16x8xf32>
    %47 = vector.shape_cast %43 : vector<2x16x8xf32> to vector<1x2x16x8xf32>
    %48 = vector.shape_cast %44 : vector<2x16x8xf32> to vector<1x2x16x8xf32>
    %49 = vector.shape_cast %45 : vector<2x16x8xf32> to vector<1x2x16x8xf32>
    %50 = vector.shape_cast %46 : vector<2x16x8xf32> to vector<1x2x16x8xf32>
    %51 = tpu.concatenate %47, %48, %49, %50 in 0 : vector<1x2x16x8xf32>, vector<1x2x16x8xf32>, vector<1x2x16x8xf32>, vector<1x2x16x8xf32> -> vector<4x2x16x8xf32>
    %52 = vector.shape_cast %51 : vector<4x2x16x8xf32> to vector<8x16x8xf32>
    %53 = arith.truncf %52 : vector<8x16x8xf32> to vector<8x16x8xbf16>
    "tpu.trace_start"() <{level = 10 : i32, message = "gqd,gkd->gqk"}> : () -> ()
    %cst_16 = arith.constant dense<0.000000e+00> : vector<8x16x16xf32>
    %54 = tpu.matmul %29, %41, %cst_16 {dimension_numbers = #tpu.dot_dimension_numbers<[2], [2], [1], [1], [0, 0, 0, 1, 1, 1], [0], [0]>} : vector<8x16x8xbf16>, vector<8x16x8xbf16>, vector<8x16x16xf32> -> vector<8x16x16xf32>
    "tpu.trace_stop"() : () -> ()
    %cst_17 = arith.constant dense<0xFF800000> : vector<8x16xf32>
    %55 = vector.multi_reduction <maximumf>, %54, %cst_17 [2] : vector<8x16x16xf32> to vector<8x16xf32>
    %56 = vector.shape_cast %55 : vector<8x16xf32> to vector<8x16x1xf32>
    %57 = vector.broadcast %56 : vector<8x16x1xf32> to vector<8x16x16xf32>
    %58 = arith.subf %54, %57 : vector<8x16x16xf32>
    %59 = math.exp %58 : vector<8x16x16xf32>
    %cst_18 = arith.constant dense<0.000000e+00> : vector<8x16xf32>
    %60 = vector.multi_reduction <add>, %59, %cst_18 [2] : vector<8x16x16xf32> to vector<8x16xf32>
    %61 = vector.shape_cast %60 : vector<8x16xf32> to vector<8x16x1xf32>
    %62 = tpu.reciprocal %61 {approx = true} : vector<8x16x1xf32> -> vector<8x16x1xf32>
    %63 = vector.broadcast %62 : vector<8x16x1xf32> to vector<8x16x16xf32>
    %64 = arith.mulf %59, %63 : vector<8x16x16xf32>
    %65 = arith.truncf %64 : vector<8x16x16xf32> to vector<8x16x16xbf16>
    "tpu.trace_start"() <{level = 10 : i32, message = "gqk,gkd->gqd"}> : () -> ()
    %cst_19 = arith.constant dense<0.000000e+00> : vector<8x16x8xf32>
    %66 = tpu.matmul %65, %53, %cst_19 {dimension_numbers = #tpu.dot_dimension_numbers<[2], [1], [1], [2], [0, 0, 0, 1, 1, 2], [0], [0]>} : vector<8x16x16xbf16>, vector<8x16x8xbf16>, vector<8x16x8xf32> -> vector<8x16x8xf32>
    "tpu.trace_stop"() : () -> ()
    %67 = vector.shape_cast %66 : vector<8x16x8xf32> to vector<4x32x8xf32>
    %68 = arith.truncf %67 : vector<4x32x8xf32> to vector<4x32x8xbf16>
    %c0_20 = arith.constant 0 : index
    %c0_21 = arith.constant 0 : index
    %c0_22 = arith.constant 0 : index
    %69 = vector.load %arg8[%c0_20, %c0_21, %c0_22] : memref<4x8x32xbf16, #tpu.memory_space<vmem>>, vector<4x8x32xbf16>
    "tpu.trace_start"() <{level = 10 : i32, message = "hnd,hdm->hnm"}> : () -> ()
    %cst_23 = arith.constant dense<0.000000e+00> : vector<4x32x32xf32>
    %70 = tpu.matmul %68, %69, %cst_23 {dimension_numbers = #tpu.dot_dimension_numbers<[2], [1], [1], [2], [0, 0, 0, 1, 1, 2], [0], [0]>} : vector<4x32x8xbf16>, vector<4x8x32xbf16>, vector<4x32x32xf32> -> vector<4x32x32xf32>
    "tpu.trace_stop"() : () -> ()
    %cst_24 = arith.constant dense<0.000000e+00> : vector<32x32xf32>
    %71 = vector.multi_reduction <add>, %70, %cst_24 [0] : vector<4x32x32xf32> to vector<32x32xf32>
    %c0_25 = arith.constant 0 : index
    %c0_26 = arith.constant 0 : index
    %72 = vector.load %arg9[%c0_25, %c0_26] : memref<1x32xf32, #tpu.memory_space<vmem>>, vector<1x32xf32>
    %73 = vector.broadcast %72 : vector<1x32xf32> to vector<32x32xf32>
    %74 = arith.addf %71, %73 : vector<32x32xf32>
    %75 = arith.addf %74, %1 : vector<32x32xf32>
    %c0_27 = arith.constant 0 : index
    %c0_28 = arith.constant 0 : index
    %76 = vector.load %arg10[%c0_27, %c0_28] : memref<1x32xf32, #tpu.memory_space<vmem>>, vector<1x32xf32>
    %c0_29 = arith.constant 0 : index
    %c0_30 = arith.constant 0 : index
    %77 = vector.load %arg11[%c0_29, %c0_30] : memref<1x32xf32, #tpu.memory_space<vmem>>, vector<1x32xf32>
    %cst_31 = arith.constant dense<0.000000e+00> : vector<32xf32>
    %78 = vector.multi_reduction <add>, %75, %cst_31 [1] : vector<32x32xf32> to vector<32xf32>
    %79 = vector.shape_cast %78 : vector<32xf32> to vector<32x1xf32>
    %cst_32 = arith.constant 3.200000e+01 : f32
    %80 = vector.broadcast %cst_32 : f32 to vector<32x1xf32>
    %81 = arith.divf %79, %80 : vector<32x1xf32>
    %82 = vector.broadcast %81 : vector<32x1xf32> to vector<32x32xf32>
    %83 = arith.subf %75, %82 : vector<32x32xf32>
    %84 = arith.mulf %83, %83 : vector<32x32xf32>
    %cst_33 = arith.constant dense<0.000000e+00> : vector<32xf32>
    %85 = vector.multi_reduction <add>, %84, %cst_33 [1] : vector<32x32xf32> to vector<32xf32>
    %86 = vector.shape_cast %85 : vector<32xf32> to vector<32x1xf32>
    %cst_34 = arith.constant 3.200000e+01 : f32
    %87 = vector.broadcast %cst_34 : f32 to vector<32x1xf32>
    %88 = arith.divf %86, %87 : vector<32x1xf32>
    %89 = vector.broadcast %81 : vector<32x1xf32> to vector<32x32xf32>
    %90 = arith.subf %75, %89 : vector<32x32xf32>
    %cst_35 = arith.constant 9.99999997E-7 : f32
    %91 = vector.broadcast %cst_35 : f32 to vector<32x1xf32>
    %92 = arith.addf %88, %91 : vector<32x1xf32>
    %93 = math.rsqrt %92 : vector<32x1xf32>
    %94 = vector.broadcast %93 : vector<32x1xf32> to vector<32x32xf32>
    %95 = arith.mulf %90, %94 : vector<32x32xf32>
    %96 = vector.broadcast %76 : vector<1x32xf32> to vector<32x32xf32>
    %97 = arith.mulf %95, %96 : vector<32x32xf32>
    %98 = vector.broadcast %77 : vector<1x32xf32> to vector<32x32xf32>
    %99 = arith.addf %97, %98 : vector<32x32xf32>
    %100 = arith.truncf %99 : vector<32x32xf32> to vector<32x32xbf16>
    %c0_36 = arith.constant 0 : index
    %c0_37 = arith.constant 0 : index
    %101 = vector.load %arg12[%c0_36, %c0_37] : memref<32x64xbf16, #tpu.memory_space<vmem>>, vector<32x64xbf16>
    %cst_38 = arith.constant dense<0.000000e+00> : vector<32x64xf32>
    %102 = tpu.matmul %100, %101, %cst_38 {dimension_numbers = #tpu.dot_dimension_numbers<[1], [0], [0], [1], [0, 0, 1, 1], [], []>} : vector<32x32xbf16>, vector<32x64xbf16>, vector<32x64xf32> -> vector<32x64xf32>
    %c0_39 = arith.constant 0 : index
    %c0_40 = arith.constant 0 : index
    %103 = vector.load %arg13[%c0_39, %c0_40] : memref<1x64xf32, #tpu.memory_space<vmem>>, vector<1x64xf32>
    %104 = vector.broadcast %103 : vector<1x64xf32> to vector<32x64xf32>
    %105 = arith.addf %102, %104 : vector<32x64xf32>
    %cst_41 = arith.constant 0.000000e+00 : f32
    %106 = vector.broadcast %cst_41 : f32 to vector<32x64xf32>
    %107 = arith.maximumf %105, %106 : vector<32x64xf32>
    %108 = arith.truncf %107 : vector<32x64xf32> to vector<32x64xbf16>
    %c0_42 = arith.constant 0 : index
    %c0_43 = arith.constant 0 : index
    %109 = vector.load %arg14[%c0_42, %c0_43] : memref<64x32xbf16, #tpu.memory_space<vmem>>, vector<64x32xbf16>
    %cst_44 = arith.constant dense<0.000000e+00> : vector<32x32xf32>
    %110 = tpu.matmul %108, %109, %cst_44 {dimension_numbers = #tpu.dot_dimension_numbers<[1], [0], [0], [1], [0, 0, 1, 1], [], []>} : vector<32x64xbf16>, vector<64x32xbf16>, vector<32x32xf32> -> vector<32x32xf32>
    %c0_45 = arith.constant 0 : index
    %c0_46 = arith.constant 0 : index
    %111 = vector.load %arg15[%c0_45, %c0_46] : memref<1x32xf32, #tpu.memory_space<vmem>>, vector<1x32xf32>
    %112 = vector.broadcast %111 : vector<1x32xf32> to vector<32x32xf32>
    %113 = arith.addf %110, %112 : vector<32x32xf32>
    %114 = arith.addf %113, %99 : vector<32x32xf32>
    %c0_47 = arith.constant 0 : index
    %c0_48 = arith.constant 0 : index
    %115 = vector.load %arg16[%c0_47, %c0_48] : memref<1x32xf32, #tpu.memory_space<vmem>>, vector<1x32xf32>
    %c0_49 = arith.constant 0 : index
    %c0_50 = arith.constant 0 : index
    %116 = vector.load %arg17[%c0_49, %c0_50] : memref<1x32xf32, #tpu.memory_space<vmem>>, vector<1x32xf32>
    %cst_51 = arith.constant dense<0.000000e+00> : vector<32xf32>
    %117 = vector.multi_reduction <add>, %114, %cst_51 [1] : vector<32x32xf32> to vector<32xf32>
    %118 = vector.shape_cast %117 : vector<32xf32> to vector<32x1xf32>
    %cst_52 = arith.constant 3.200000e+01 : f32
    %119 = vector.broadcast %cst_52 : f32 to vector<32x1xf32>
    %120 = arith.divf %118, %119 : vector<32x1xf32>
    %121 = vector.broadcast %120 : vector<32x1xf32> to vector<32x32xf32>
    %122 = arith.subf %114, %121 : vector<32x32xf32>
    %123 = arith.mulf %122, %122 : vector<32x32xf32>
    %cst_53 = arith.constant dense<0.000000e+00> : vector<32xf32>
    %124 = vector.multi_reduction <add>, %123, %cst_53 [1] : vector<32x32xf32> to vector<32xf32>
    %125 = vector.shape_cast %124 : vector<32xf32> to vector<32x1xf32>
    %cst_54 = arith.constant 3.200000e+01 : f32
    %126 = vector.broadcast %cst_54 : f32 to vector<32x1xf32>
    %127 = arith.divf %125, %126 : vector<32x1xf32>
    %128 = vector.broadcast %120 : vector<32x1xf32> to vector<32x32xf32>
    %129 = arith.subf %114, %128 : vector<32x32xf32>
    %cst_55 = arith.constant 9.99999997E-7 : f32
    %130 = vector.broadcast %cst_55 : f32 to vector<32x1xf32>
    %131 = arith.addf %127, %130 : vector<32x1xf32>
    %132 = math.rsqrt %131 : vector<32x1xf32>
    %133 = vector.broadcast %132 : vector<32x1xf32> to vector<32x32xf32>
    %134 = arith.mulf %129, %133 : vector<32x32xf32>
    %135 = vector.broadcast %115 : vector<1x32xf32> to vector<32x32xf32>
    %136 = arith.mulf %134, %135 : vector<32x32xf32>
    %137 = vector.broadcast %116 : vector<1x32xf32> to vector<32x32xf32>
    %138 = arith.addf %136, %137 : vector<32x32xf32>
    %139 = vector.shape_cast %138 : vector<32x32xf32> to vector<2x16x32xf32>
    %c0_56 = arith.constant 0 : index
    %c0_57 = arith.constant 0 : index
    %c0_58 = arith.constant 0 : index
    %140 = vector.load %arg18[%c0_56, %c0_57, %c0_58] : memref<2x16x32xf32, #tpu.memory_space<vmem>>, vector<2x16x32xf32>
    tpu.vector_store %arg18[%c0_56, %c0_57, %c0_58], %139 {strides = array<i32>} : memref<2x16x32xf32, #tpu.memory_space<vmem>>, vector<2x16x32xf32>,
    return
  }
  func.func @transform_0(%arg0: i32) -> (i32, i32, i32) {
    %c0_i32 = arith.constant 0 : i32
    %c0_i32_0 = arith.constant 0 : i32
    %c0_i32_1 = arith.constant 0 : i32
    return %arg0, %c0_i32, %c0_i32_0 : i32, i32, i32
  }
  func.func @transform_1(%arg0: i32) -> (i32, i32) {
    %c0_i32 = arith.constant 0 : i32
    %c0_i32_0 = arith.constant 0 : i32
    %c0_i32_1 = arith.constant 0 : i32
    return %c0_i32, %c0_i32_0 : i32, i32
  }
  func.func @transform_2(%arg0: i32) -> (i32, i32) {
    %c0_i32 = arith.constant 0 : i32
    %c0_i32_0 = arith.constant 0 : i32
    %c0_i32_1 = arith.constant 0 : i32
    return %c0_i32, %c0_i32_0 : i32, i32
  }
  func.func @transform_3(%arg0: i32) -> (i32, i32) {
    %c0_i32 = arith.constant 0 : i32
    %c0_i32_0 = arith.constant 0 : i32
    %c0_i32_1 = arith.constant 0 : i32
    return %c0_i32, %c0_i32_0 : i32, i32
  }
  func.func @transform_4(%arg0: i32) -> (i32, i32) {
    %c0_i32 = arith.constant 0 : i32
    %c0_i32_0 = arith.constant 0 : i32
    %c0_i32_1 = arith.constant 0 : i32
    return %c0_i32, %c0_i32_0 : i32, i32
  }
  func.func @transform_5(%arg0: i32) -> (i32, i32) {
    %c0_i32 = arith.constant 0 : i32
    %c0_i32_0 = arith.constant 0 : i32
    %c0_i32_1 = arith.constant 0 : i32
    return %c0_i32, %c0_i32_0 : i32, i32
  }
  func.func @transform_6(%arg0: i32) -> (i32, i32) {
    %c0_i32 = arith.constant 0 : i32
    %c0_i32_0 = arith.constant 0 : i32
    %c0_i32_1 = arith.constant 0 : i32
    return %c0_i32, %c0_i32_0 : i32, i32
  }
  func.func @transform_7(%arg0: i32) -> (i32, i32, i32) {
    %c0_i32 = arith.constant 0 : i32
    %c0_i32_0 = arith.constant 0 : i32
    %c0_i32_1 = arith.constant 0 : i32
    %c0_i32_2 = arith.constant 0 : i32
    return %c0_i32, %c0_i32_0, %c0_i32_1 : i32, i32, i32
  }
  func.func @transform_8(%arg0: i32) -> (i32, i32) {
    %c0_i32 = arith.constant 0 : i32
    %c0_i32_0 = arith.constant 0 : i32
    %c0_i32_1 = arith.constant 0 : i32
    return %c0_i32, %c0_i32_0 : i32, i32
  }
  func.func @transform_9(%arg0: i32) -> (i32, i32) {
    %c0_i32 = arith.constant 0 : i32
    %c0_i32_0 = arith.constant 0 : i32
    %c0_i32_1 = arith.constant 0 : i32
    return %c0_i32, %c0_i32_0 : i32, i32
  }
  func.func @transform_10(%arg0: i32) -> (i32, i32) {
    %c0_i32 = arith.constant 0 : i32
    %c0_i32_0 = arith.constant 0 : i32
    %c0_i32_1 = arith.constant 0 : i32
    return %c0_i32, %c0_i32_0 : i32, i32
  }
  func.func @transform_11(%arg0: i32) -> (i32, i32) {
    %c0_i32 = arith.constant 0 : i32
    %c0_i32_0 = arith.constant 0 : i32
    %c0_i32_1 = arith.constant 0 : i32
    return %c0_i32, %c0_i32_0 : i32, i32
  }
  func.func @transform_12(%arg0: i32) -> (i32, i32) {
    %c0_i32 = arith.constant 0 : i32
    %c0_i32_0 = arith.constant 0 : i32
    %c0_i32_1 = arith.constant 0 : i32
    return %c0_i32, %c0_i32_0 : i32, i32
  }
  func.func @transform_13(%arg0: i32) -> (i32, i32) {
    %c0_i32 = arith.constant 0 : i32
    %c0_i32_0 = arith.constant 0 : i32
    %c0_i32_1 = arith.constant 0 : i32
    return %c0_i32, %c0_i32_0 : i32, i32
  }
  func.func @transform_14(%arg0: i32) -> (i32, i32) {
    %c0_i32 = arith.constant 0 : i32
    %c0_i32_0 = arith.constant 0 : i32
    %c0_i32_1 = arith.constant 0 : i32
    return %c0_i32, %c0_i32_0 : i32, i32
  }
  func.func @transform_15(%arg0: i32) -> (i32, i32) {
    %c0_i32 = arith.constant 0 : i32
    %c0_i32_0 = arith.constant 0 : i32
    %c0_i32_1 = arith.constant 0 : i32
    return %c0_i32, %c0_i32_0 : i32, i32
  }
  func.func @transform_16(%arg0: i32) -> (i32, i32) {
    %c0_i32 = arith.constant 0 : i32
    %c0_i32_0 = arith.constant 0 : i32
    %c0_i32_1 = arith.constant 0 : i32
    return %c0_i32, %c0_i32_0 : i32, i32
  }
  func.func @transform_17(%arg0: i32) -> (i32, i32, i32) {
    %c0_i32 = arith.constant 0 : i32
    %c0_i32_0 = arith.constant 0 : i32
    %c0_i32_1 = arith.constant 0 : i32
    return %arg0, %c0_i32, %c0_i32_0 : i32, i32, i32
  }
}

</mosaic_0001>

<llo_original>
// kernel: tpu_custom_call.1
$region0: #{tpu_custom_call.1}
  #allocation0 [shape = 'u32[]', space=smem, size = 0x4, offset = 0x4, fixed_abs, tag = 'smem constant byte address 0x4 - core index']
  #allocation1 [shape = 'u32[144,128]{1,0:T(1,128)}', space=vmem, size = 0x12000, scoped, tag = 'internal scratch']
  %s0 = inlined_call_operand.hbm [shape: f32[4,16,32], index: 0, kind: input, shape index: {}]
  %s1 = inlined_call_operand.vmem [shape: bf16[32,32], index: 1, kind: input, shape index: {}]
  %s2 = inlined_call_operand.vmem [shape: f32[1,32], index: 2, kind: input, shape index: {}]
  %s3 = inlined_call_operand.vmem [shape: bf16[32,32], index: 3, kind: input, shape index: {}]
  %s4 = inlined_call_operand.vmem [shape: f32[1,32], index: 4, kind: input, shape index: {}]
  %s5 = inlined_call_operand.vmem [shape: bf16[32,32], index: 5, kind: input, shape index: {}]
  %s6 = inlined_call_operand.vmem [shape: f32[1,32], index: 6, kind: input, shape index: {}]
  %s7 = inlined_call_operand.hbm [shape: bf16[4,8,32], index: 7, kind: input, shape index: {}]
  %s8 = inlined_call_operand.vmem [shape: f32[1,32], index: 8, kind: input, shape index: {}]
  %s9 = inlined_call_operand.vmem [shape: f32[1,32], index: 9, kind: input, shape index: {}]
  %s10 = inlined_call_operand.vmem [shape: f32[1,32], index: 10, kind: input, shape index: {}]
  %s11 = inlined_call_operand.hbm [shape: bf16[32,64], index: 11, kind: input, shape index: {}]
  %s12 = inlined_call_operand.vmem [shape: f32[1,64], index: 12, kind: input, shape index: {}]
  %s13 = inlined_call_operand.vmem [shape: bf16[64,32], index: 13, kind: input, shape index: {}]
  %s14 = inlined_call_operand.vmem [shape: f32[1,32], index: 14, kind: input, shape index: {}]
  %s15 = inlined_call_operand.vmem [shape: f32[1,32], index: 15, kind: input, shape index: {}]
  %s16 = inlined_call_operand.vmem [shape: f32[1,32], index: 16, kind: input, shape index: {}]
  %s17 = inlined_call_operand.hbm [shape: f32[4,16,32], index: 17, kind: output, shape index: {}]
  %s18 = sld [smem:[#allocation0]]
  $region113: #{tpu_custom_call.1} parent=0
    _
  %s20 = ssub.s32 1, %s18
  %s21 = scalar_select 0, %s20, %s18
  $region1: #{tpu_custom_call.1} parent=0
    #allocation2 [shape = 'u8[32768]{0}', space=vmem, size = 0x8000, scoped, tag = 'input window, operand 0']
    #allocation3 [shape = 's32[2]{0}', space=sflag, size = 0x8, scoped, tag = 'scoped memory for tpu_custom_call.1']
    #allocation4 [shape = 's32[2]{0}', space=sflag, size = 0x8, scoped, tag = 'scoped memory for tpu_custom_call.1']
    #allocation5 [shape = 'u8[8192]{0}', space=vmem, size = 0x2000, scoped, tag = 'input window, operand 7, single buffered']
    #allocation6 [shape = 's32[1]{0}', space=sflag, size = 0x4, scoped, tag = 'scoped memory for tpu_custom_call.1']
    #allocation7 [shape = 'u8[8192]{0}', space=vmem, size = 0x2000, scoped, tag = 'input window, operand 11, single buffered']
    #allocation8 [shape = 'u8[32768]{0}', space=vmem, size = 0x8000, scoped, tag = 'output window, operand 0']
    %22 = vsyncpa [#allocation3], 0
    %s23 = scalar_lea.sflag [#allocation3], 1
    %24 = vsyncpa %s23, 0
    %25 = vsyncpa [#allocation6], 0
    %26 = vsyncpa [#allocation4], 0
    %s27 = scalar_lea.sflag [#allocation4], 1
    %28 = vsyncpa %s27, 0
    loop: start=0, step=1, limit=4
    $region2: #{tpu_custom_call.1} parent=1 // loop_pre_header
      _
    $region3: #{tpu_custom_call.1} parent=1 // loop_header
      %s30 = sphi 0, %s34
      %p31 = scmp.ge.s32.totalorder %s30, 4
      %s40 = sphi 0, %s42
      %s43 = sphi 0, %s40
      %s44 = sphi 0, %s43
      %s60 = sphi 0, %s44
      %s64 = sphi 0, %s64
      %s66 = sphi 0, %s64
      %s67 = sphi 0, %s66
      %s81 = sphi 0, %s67
      %s85 = sphi 0, %s85
      %s87 = sphi 0, %s85
      %s88 = sphi 0, %s87
      %s102 = sphi 0, %s88
      %s106 = sphi 0, %s106
      %s108 = sphi 0, %s106
      %s109 = sphi 0, %s108
      %s123 = sphi 0, %s109
      %s127 = sphi 0, %s127
      %s129 = sphi 0, %s127
      %s130 = sphi 0, %s129
      %s144 = sphi 0, %s130
      %s148 = sphi 0, %s148
      %s150 = sphi 0, %s148
      %s151 = sphi 0, %s150
      %s165 = sphi 0, %s151
      %s169 = sphi 0, %s169
      %s171 = sphi 0, %s169
      %s172 = sphi 0, %s171
      %s186 = sphi 0, %s172
      %s190 = sphi 0, %s190
      %s192 = sphi 0, %s190
      %s193 = sphi 0, %s192
      %s207 = sphi 0, %s193
      %s211 = sphi 0, %s211
      %s213 = sphi 0, %s211
      %s214 = sphi 0, %s213
      %s228 = sphi 0, %s214
      %s232 = sphi 0, %s232
      %s234 = sphi 0, %s232
      %s235 = sphi 0, %s234
      %s249 = sphi 0, %s235
      %s253 = sphi 0, %s253
      %s255 = sphi 0, %s253
      %s256 = sphi 0, %s255
      %s270 = sphi 0, %s256
      %s274 = sphi 0, %s274
      %s276 = sphi 0, %s274
      %s277 = sphi 0, %s276
      %s291 = sphi 0, %s277
      %s295 = sphi 0, %s295
      %s297 = sphi 0, %s295
      %s298 = sphi 0, %s297
      %s312 = sphi 0, %s298
      %s316 = sphi 0, %s316
      %s318 = sphi 0, %s316
      %s319 = sphi 0, %s318
      %s333 = sphi 0, %s319
      %s337 = sphi 0, %s337
      %s339 = sphi 0, %s337
      %s340 = sphi 0, %s339
      %s354 = sphi 0, %s340
      %s358 = sphi 0, %s358
      %s360 = sphi 0, %s358
      %s361 = sphi 0, %s360
      %s375 = sphi 0, %s361
      %s379 = sphi 0, %s379
      %s381 = sphi 0, %s379
      %s382 = sphi 0, %s381
      %s396 = sphi 0, %s382
      %s402 = sphi 0, %s404
      %s405 = sphi 0, %s402
      %s406 = sphi 0, %s405
      %s422 = sphi 0, %s406
    $region4: #{tpu_custom_call.1} parent=1 // loop_header_branch
      %33 = sbr.rel (%p31) target = $region8
    $region5: #{tpu_custom_call.1} parent=1 // loop_body
      %s35 = ssub.s32 %s30, 1
      %s36 = ssub.s32 %s30, 2
      %s37 = sadd.s32 %s30, 1
      %s38 = ssub.s32 %s30, %s37
      %p39 = scmp.eq.s32.totalorder %s38, 0
      %s41 = sadd.s32 %s40, 1
      %s42 = scalar_select %p39, %s40, %s41
      %p45 = pneg %p39
      %p46 = scmp.eq.s32.totalorder %s30, 1
      %p47 = por %p45, %p46
      %p48 = scmp.ne.s32.totalorder %s40, %s43
      %p49 = scmp.eq.s32.totalorder %s30, 0
      %p50 = por %p48, %p49
      %p51 = scmp.ne.s32.totalorder %s40, %s43
      %p52 = scmp.eq.s32.totalorder %s35, 1
      %p53 = por %p51, %p52
      %p54 = scmp.ne.s32.totalorder %s43, %s44
      %p55 = scmp.eq.s32.totalorder %s35, 0
      %p56 = por %p54, %p55
      %p57 = scmp.ne.s32.totalorder %s43, %s44
      %p58 = scmp.eq.s32.totalorder %s36, 1
      %p59 = por %p57, %p58
      %p61 = scmp.ne.s32.totalorder %s44, %s60
      %p62 = scmp.eq.s32.totalorder %s36, 0
      %p63 = por %p61, %p62
      %s65 = sadd.s32 %s64, 1
      %p68 = scmp.eq.s32.totalorder %s30, 1
      %p69 = scmp.ne.s32.totalorder %s64, %s66
      %p70 = scmp.eq.s32.totalorder %s30, 0
      %p71 = por %p69, %p70
      %p72 = scmp.ne.s32.totalorder %s64, %s66
      %p73 = scmp.eq.s32.totalorder %s35, 1
      %p74 = por %p72, %p73
      %p75 = scmp.ne.s32.totalorder %s66, %s67
      %p76 = scmp.eq.s32.totalorder %s35, 0
      %p77 = por %p75, %p76
      %p78 = scmp.ne.s32.totalorder %s66, %s67
      %p79 = scmp.eq.s32.totalorder %s36, 1
      %p80 = por %p78, %p79
      %p82 = scmp.ne.s32.totalorder %s67, %s81
      %p83 = scmp.eq.s32.totalorder %s36, 0
      %p84 = por %p82, %p83
      %s86 = sadd.s32 %s85, 1
      %p89 = scmp.eq.s32.totalorder %s30, 1
      %p90 = scmp.ne.s32.totalorder %s85, %s87
      %p91 = scmp.eq.s32.totalorder %s30, 0
      %p92 = por %p90, %p91
      %p93 = scmp.ne.s32.totalorder %s85, %s87
      %p94 = scmp.eq.s32.totalorder %s35, 1
      %p95 = por %p93, %p94
      %p96 = scmp.ne.s32.totalorder %s87, %s88
      %p97 = scmp.eq.s32.totalorder %s35, 0
      %p98 = por %p96, %p97
      %p99 = scmp.ne.s32.totalorder %s87, %s88
      %p100 = scmp.eq.s32.totalorder %s36, 1
      %p101 = por %p99, %p100
      %p103 = scmp.ne.s32.totalorder %s88, %s102
      %p104 = scmp.eq.s32.totalorder %s36, 0
      %p105 = por %p103, %p104
      %s107 = sadd.s32 %s106, 1
      %p110 = scmp.eq.s32.totalorder %s30, 1
      %p111 = scmp.ne.s32.totalorder %s106, %s108
      %p112 = scmp.eq.s32.totalorder %s30, 0
      %p113 = por %p111, %p112
      %p114 = scmp.ne.s32.totalorder %s106, %s108
      %p115 = scmp.eq.s32.totalorder %s35, 1
      %p116 = por %p114, %p115
      %p117 = scmp.ne.s32.totalorder %s108, %s109
      %p118 = scmp.eq.s32.totalorder %s35, 0
      %p119 = por %p117, %p118
      %p120 = scmp.ne.s32.totalorder %s108, %s109
      %p121 = scmp.eq.s32.totalorder %s36, 1
      %p122 = por %p120, %p121
      %p124 = scmp.ne.s32.totalorder %s109, %s123
      %p125 = scmp.eq.s32.totalorder %s36, 0
      %p126 = por %p124, %p125
      %s128 = sadd.s32 %s127, 1
      %p131 = scmp.eq.s32.totalorder %s30, 1
      %p132 = scmp.ne.s32.totalorder %s127, %s129
      %p133 = scmp.eq.s32.totalorder %s30, 0
      %p134 = por %p132, %p133
      %p135 = scmp.ne.s32.totalorder %s127, %s129
      %p136 = scmp.eq.s32.totalorder %s35, 1
      %p137 = por %p135, %p136
      %p138 = scmp.ne.s32.totalorder %s129, %s130
      %p139 = scmp.eq.s32.totalorder %s35, 0
      %p140 = por %p138, %p139
      %p141 = scmp.ne.s32.totalorder %s129, %s130
      %p142 = scmp.eq.s32.totalorder %s36, 1
      %p143 = por %p141, %p142
      %p145 = scmp.ne.s32.totalorder %s130, %s144
      %p146 = scmp.eq.s32.totalorder %s36, 0
      %p147 = por %p145, %p146
      %s149 = sadd.s32 %s148, 1
      %p152 = scmp.eq.s32.totalorder %s30, 1
      %p153 = scmp.ne.s32.totalorder %s148, %s150
      %p154 = scmp.eq.s32.totalorder %s30, 0
      %p155 = por %p153, %p154
      %p156 = scmp.ne.s32.totalorder %s148, %s150
      %p157 = scmp.eq.s32.totalorder %s35, 1
      %p158 = por %p156, %p157
      %p159 = scmp.ne.s32.totalorder %s150, %s151
      %p160 = scmp.eq.s32.totalorder %s35, 0
      %p161 = por %p159, %p160
      %p162 = scmp.ne.s32.totalorder %s150, %s151
      %p163 = scmp.eq.s32.totalorder %s36, 1
      %p164 = por %p162, %p163
      %p166 = scmp.ne.s32.totalorder %s151, %s165
      %p167 = scmp.eq.s32.totalorder %s36, 0
      %p168 = por %p166, %p167
      %s170 = sadd.s32 %s169, 1
      %p173 = scmp.eq.s32.totalorder %s30, 1
      %p174 = scmp.ne.s32.totalorder %s169, %s171
      %p175 = scmp.eq.s32.totalorder %s30, 0
      %p176 = por %p174, %p175
      %p177 = scmp.ne.s32.totalorder %s169, %s171
      %p178 = scmp.eq.s32.totalorder %s35, 1
      %p179 = por %p177, %p178
      %p180 = scmp.ne.s32.totalorder %s171, %s172
      %p181 = scmp.eq.s32.totalorder %s35, 0
      %p182 = por %p180, %p181
      %p183 = scmp.ne.s32.totalorder %s171, %s172
      %p184 = scmp.eq.s32.totalorder %s36, 1
      %p185 = por %p183, %p184
      %p187 = scmp.ne.s32.totalorder %s172, %s186
      %p188 = scmp.eq.s32.totalorder %s36, 0
      %p189 = por %p187, %p188
      %s191 = sadd.s32 %s190, 1
      %p194 = scmp.eq.s32.totalorder %s30, 1
      %p195 = scmp.ne.s32.totalorder %s190, %s192
      %p196 = scmp.eq.s32.totalorder %s30, 0
      %p197 = por %p195, %p196
      %p198 = scmp.ne.s32.totalorder %s190, %s192
      %p199 = scmp.eq.s32.totalorder %s35, 1
      %p200 = por %p198, %p199
      %p201 = scmp.ne.s32.totalorder %s192, %s193
      %p202 = scmp.eq.s32.totalorder %s35, 0
      %p203 = por %p201, %p202
      %p204 = scmp.ne.s32.totalorder %s192, %s193
      %p205 = scmp.eq.s32.totalorder %s36, 1
      %p206 = por %p204, %p205
      %p208 = scmp.ne.s32.totalorder %s193, %s207
      %p209 = scmp.eq.s32.totalorder %s36, 0
      %p210 = por %p208, %p209
      %s212 = sadd.s32 %s211, 1
      %p215 = scmp.eq.s32.totalorder %s30, 1
      %p216 = scmp.ne.s32.totalorder %s211, %s213
      %p217 = scmp.eq.s32.totalorder %s30, 0
      %p218 = por %p216, %p217
      %p219 = scmp.ne.s32.totalorder %s211, %s213
      %p220 = scmp.eq.s32.totalorder %s35, 1
      %p221 = por %p219, %p220
      %p222 = scmp.ne.s32.totalorder %s213, %s214
      %p223 = scmp.eq.s32.totalorder %s35, 0
      %p224 = por %p222, %p223
      %p225 = scmp.ne.s32.totalorder %s213, %s214
      %p226 = scmp.eq.s32.totalorder %s36, 1
      %p227 = por %p225, %p226
      %p229 = scmp.ne.s32.totalorder %s214, %s228
      %p230 = scmp.eq.s32.totalorder %s36, 0
      %p231 = por %p229, %p230
      %s233 = sadd.s32 %s232, 1
      %p236 = scmp.eq.s32.totalorder %s30, 1
      %p237 = scmp.ne.s32.totalorder %s232, %s234
      %p238 = scmp.eq.s32.totalorder %s30, 0
      %p239 = por %p237, %p238
      %p240 = scmp.ne.s32.totalorder %s232, %s234
      %p241 = scmp.eq.s32.totalorder %s35, 1
      %p242 = por %p240, %p241
      %p243 = scmp.ne.s32.totalorder %s234, %s235
      %p244 = scmp.eq.s32.totalorder %s35, 0
      %p245 = por %p243, %p244
      %p246 = scmp.ne.s32.totalorder %s234, %s235
      %p247 = scmp.eq.s32.totalorder %s36, 1
      %p248 = por %p246, %p247
      %p250 = scmp.ne.s32.totalorder %s235, %s249
      %p251 = scmp.eq.s32.totalorder %s36, 0
      %p252 = por %p250, %p251
      %s254 = sadd.s32 %s253, 1
      %p257 = scmp.eq.s32.totalorder %s30, 1
      %p258 = scmp.ne.s32.totalorder %s253, %s255
      %p259 = scmp.eq.s32.totalorder %s30, 0
      %p260 = por %p258, %p259
      %p261 = scmp.ne.s32.totalorder %s253, %s255
      %p262 = scmp.eq.s32.totalorder %s35, 1
      %p263 = por %p261, %p262
      %p264 = scmp.ne.s32.totalorder %s255, %s256
      %p265 = scmp.eq.s32.totalorder %s35, 0
      %p266 = por %p264, %p265
      %p267 = scmp.ne.s32.totalorder %s255, %s256
      %p268 = scmp.eq.s32.totalorder %s36, 1
      %p269 = por %p267, %p268
      %p271 = scmp.ne.s32.totalorder %s256, %s270
      %p272 = scmp.eq.s32.totalorder %s36, 0
      %p273 = por %p271, %p272
      %s275 = sadd.s32 %s274, 1
      %p278 = scmp.eq.s32.totalorder %s30, 1
      %p279 = scmp.ne.s32.totalorder %s274, %s276
      %p280 = scmp.eq.s32.totalorder %s30, 0
      %p281 = por %p279, %p280
      %p282 = scmp.ne.s32.totalorder %s274, %s276
      %p283 = scmp.eq.s32.totalorder %s35, 1
      %p284 = por %p282, %p283
      %p285 = scmp.ne.s32.totalorder %s276, %s277
      %p286 = scmp.eq.s32.totalorder %s35, 0
      %p287 = por %p285, %p286
      %p288 = scmp.ne.s32.totalorder %s276, %s277
      %p289 = scmp.eq.s32.totalorder %s36, 1
      %p290 = por %p288, %p289
      %p292 = scmp.ne.s32.totalorder %s277, %s291
      %p293 = scmp.eq.s32.totalorder %s36, 0
      %p294 = por %p292, %p293
      %s296 = sadd.s32 %s295, 1
      %p299 = scmp.eq.s32.totalorder %s30, 1
      %p300 = scmp.ne.s32.totalorder %s295, %s297
      %p301 = scmp.eq.s32.totalorder %s30, 0
      %p302 = por %p300, %p301
      %p303 = scmp.ne.s32.totalorder %s295, %s297
      %p304 = scmp.eq.s32.totalorder %s35, 1
      %p305 = por %p303, %p304
      %p306 = scmp.ne.s32.totalorder %s297, %s298
      %p307 = scmp.eq.s32.totalorder %s35, 0
      %p308 = por %p306, %p307
      %p309 = scmp.ne.s32.totalorder %s297, %s298
      %p310 = scmp.eq.s32.totalorder %s36, 1
      %p311 = por %p309, %p310
      %p313 = scmp.ne.s32.totalorder %s298, %s312
      %p314 = scmp.eq.s32.totalorder %s36, 0
      %p315 = por %p313, %p314
      %s317 = sadd.s32 %s316, 1
      %p320 = scmp.eq.s32.totalorder %s30, 1
      %p321 = scmp.ne.s32.totalorder %s316, %s318
      %p322 = scmp.eq.s32.totalorder %s30, 0
      %p323 = por %p321, %p322
      %p324 = scmp.ne.s32.totalorder %s316, %s318
      %p325 = scmp.eq.s32.totalorder %s35, 1
      %p326 = por %p324, %p325
      %p327 = scmp.ne.s32.totalorder %s318, %s319
      %p328 = scmp.eq.s32.totalorder %s35, 0
      %p329 = por %p327, %p328
      %p330 = scmp.ne.s32.totalorder %s318, %s319
      %p331 = scmp.eq.s32.totalorder %s36, 1
      %p332 = por %p330, %p331
      %p334 = scmp.ne.s32.totalorder %s319, %s333
      %p335 = scmp.eq.s32.totalorder %s36, 0
      %p336 = por %p334, %p335
      %s338 = sadd.s32 %s337, 1
      %p341 = scmp.eq.s32.totalorder %s30, 1
      %p342 = scmp.ne.s32.totalorder %s337, %s339
      %p343 = scmp.eq.s32.totalorder %s30, 0
      %p344 = por %p342, %p343
      %p345 = scmp.ne.s32.totalorder %s337, %s339
      %p346 = scmp.eq.s32.totalorder %s35, 1
      %p347 = por %p345, %p346
      %p348 = scmp.ne.s32.totalorder %s339, %s340
      %p349 = scmp.eq.s32.totalorder %s35, 0
      %p350 = por %p348, %p349
      %p351 = scmp.ne.s32.totalorder %s339, %s340
      %p352 = scmp.eq.s32.totalorder %s36, 1
      %p353 = por %p351, %p352
      %p355 = scmp.ne.s32.totalorder %s340, %s354
      %p356 = scmp.eq.s32.totalorder %s36, 0
      %p357 = por %p355, %p356
      %s359 = sadd.s32 %s358, 1
      %p362 = scmp.eq.s32.totalorder %s30, 1
      %p363 = scmp.ne.s32.totalorder %s358, %s360
      %p364 = scmp.eq.s32.totalorder %s30, 0
      %p365 = por %p363, %p364
      %p366 = scmp.ne.s32.totalorder %s358, %s360
      %p367 = scmp.eq.s32.totalorder %s35, 1
      %p368 = por %p366, %p367
      %p369 = scmp.ne.s32.totalorder %s360, %s361
      %p370 = scmp.eq.s32.totalorder %s35, 0
      %p371 = por %p369, %p370
      %p372 = scmp.ne.s32.totalorder %s360, %s361
      %p373 = scmp.eq.s32.totalorder %s36, 1
      %p374 = por %p372, %p373
      %p376 = scmp.ne.s32.totalorder %s361, %s375
      %p377 = scmp.eq.s32.totalorder %s36, 0
      %p378 = por %p376, %p377
      %s380 = sadd.s32 %s379, 1
      %p383 = scmp.eq.s32.totalorder %s30, 1
      %p384 = scmp.ne.s32.totalorder %s379, %s381
      %p385 = scmp.eq.s32.totalorder %s30, 0
      %p386 = por %p384, %p385
      %p387 = scmp.ne.s32.totalorder %s379, %s381
      %p388 = scmp.eq.s32.totalorder %s35, 1
      %p389 = por %p387, %p388
      %p390 = scmp.ne.s32.totalorder %s381, %s382
      %p391 = scmp.eq.s32.totalorder %s35, 0
      %p392 = por %p390, %p391
      %p393 = scmp.ne.s32.totalorder %s381, %s382
      %p394 = scmp.eq.s32.totalorder %s36, 1
      %p395 = por %p393, %p394
      %p397 = scmp.ne.s32.totalorder %s382, %s396
      %p398 = scmp.eq.s32.totalorder %s36, 0
      %p399 = por %p397, %p398
      %s400 = ssub.s32 %s30, %s37
      %p401 = scmp.eq.s32.totalorder %s400, 0
      %s403 = sadd.s32 %s402, 1
      %s404 = scalar_select %p401, %s402, %s403
      %p407 = pneg %p401
      %p408 = scmp.eq.s32.totalorder %s30, 1
      %p409 = por %p407, %p408
      %p410 = scmp.ne.s32.totalorder %s402, %s405
      %p411 = scmp.eq.s32.totalorder %s30, 0
      %p412 = por %p410, %p411
      %p413 = scmp.ne.s32.totalorder %s402, %s405
      %p414 = scmp.eq.s32.totalorder %s35, 1
      %p415 = por %p413, %p414
      %p416 = scmp.ne.s32.totalorder %s405, %s406
      %p417 = scmp.eq.s32.totalorder %s35, 0
      %p418 = por %p416, %p417
      %p419 = scmp.ne.s32.totalorder %s405, %s406
      %p420 = scmp.eq.s32.totalorder %s36, 1
      %p421 = por %p419, %p420
      %p423 = scmp.ne.s32.totalorder %s406, %s422
      %p424 = scmp.eq.s32.totalorder %s36, 0
      %p425 = por %p423, %p424
      %p426 = scmp.le.s32.totalorder 1, %s30
      %p427 = scmp.lt.s32.totalorder %s30, 3
      %p428 = pnand %p426, %p427
      %p429 = pneg %p428
      // Predicated region
      $region9: #{tpu_custom_call.1} parent=5 // pred_check
        _
      $region10: #{tpu_custom_call.1} parent=5 // pred_check_branch
        %431 = sbr.rel (%p428) target = $region12
      $region11: #{tpu_custom_call.1} parent=5 // pred_region
        %s432 = ssub.s32 %s30, 1
        // Predicated region
        $region13: #{tpu_custom_call.1} parent=11 // pred_check
          %p433 = pneg %p77
        $region14: #{tpu_custom_call.1} parent=11 // pred_check_branch
          %435 = sbr.rel (%p433) target = $region16
        $region15: #{tpu_custom_call.1} parent=11 // pred_region
          _
        $region16: #{tpu_custom_call.1} parent=11 // pred_fallthru
          _
        // Predicated region
        $region17: #{tpu_custom_call.1} parent=11 // pred_check
          %p436 = pneg %p98
        $region18: #{tpu_custom_call.1} parent=11 // pred_check_branch
          %438 = sbr.rel (%p436) target = $region20
        $region19: #{tpu_custom_call.1} parent=11 // pred_region
          _
        $region20: #{tpu_custom_call.1} parent=11 // pred_fallthru
          _
        // Predicated region
        $region21: #{tpu_custom_call.1} parent=11 // pred_check
          %p439 = pneg %p119
        $region22: #{tpu_custom_call.1} parent=11 // pred_check_branch
          %441 = sbr.rel (%p439) target = $region24
        $region23: #{tpu_custom_call.1} parent=11 // pred_region
          _
        $region24: #{tpu_custom_call.1} parent=11 // pred_fallthru
          _
        // Predicated region
        $region25: #{tpu_custom_call.1} parent=11 // pred_check
          %p442 = pneg %p140
        $region26: #{tpu_custom_call.1} parent=11 // pred_check_branch
          %444 = sbr.rel (%p442) target = $region28
        $region27: #{tpu_custom_call.1} parent=11 // pred_region
          _
        $region28: #{tpu_custom_call.1} parent=11 // pred_fallthru
          _
        // Predicated region
        $region29: #{tpu_custom_call.1} parent=11 // pred_check
          %p445 = pneg %p161
        $region30: #{tpu_custom_call.1} parent=11 // pred_check_branch
          %447 = sbr.rel (%p445) target = $region32
        $region31: #{tpu_custom_call.1} parent=11 // pred_region
          _
        $region32: #{tpu_custom_call.1} parent=11 // pred_fallthru
          _
        // Predicated region
        $region33: #{tpu_custom_call.1} parent=11 // pred_check
          %p448 = pneg %p182
        $region34: #{tpu_custom_call.1} parent=11 // pred_check_branch
          %450 = sbr.rel (%p448) target = $region36
        $region35: #{tpu_custom_call.1} parent=11 // pred_region
          _
        $region36: #{tpu_custom_call.1} parent=11 // pred_fallthru
          _
        // Predicated region
        $region37: #{tpu_custom_call.1} parent=11 // pred_check
          %p451 = pneg %p203
        $region38: #{tpu_custom_call.1} parent=11 // pred_check_branch
          %453 = sbr.rel (%p451) target = $region40
        $region39: #{tpu_custom_call.1} parent=11 // pred_region
          %s455 = ssub.s32 256, 256
          %456 = vsyncadd [#allocation6], %s455
          %s457 = sshll.u32 [#allocation5], 4
          %s458 = int_to_ptr.vmem [resolvable:$true] %s457
          %463 = dma.hbm_to_vmem [thread:$0]  %s7, 256, %s458, [#allocation6], 64, 64, 4
        $region40: #{tpu_custom_call.1} parent=11 // pred_fallthru
          _
        // Predicated region
        $region41: #{tpu_custom_call.1} parent=11 // pred_check
          %p464 = pneg %p224
        $region42: #{tpu_custom_call.1} parent=11 // pred_check_branch
          %466 = sbr.rel (%p464) target = $region44
        $region43: #{tpu_custom_call.1} parent=11 // pred_region
          _
        $region44: #{tpu_custom_call.1} parent=11 // pred_fallthru
          _
        // Predicated region
        $region45: #{tpu_custom_call.1} parent=11 // pred_check
          %p467 = pneg %p245
        $region46: #{tpu_custom_call.1} parent=11 // pred_check_branch
          %469 = sbr.rel (%p467) target = $region48
        $region47: #{tpu_custom_call.1} parent=11 // pred_region
          _
        $region48: #{tpu_custom_call.1} parent=11 // pred_fallthru
          _
        // Predicated region
        $region49: #{tpu_custom_call.1} parent=11 // pred_check
          %p470 = pneg %p266
        $region50: #{tpu_custom_call.1} parent=11 // pred_check_branch
          %472 = sbr.rel (%p470) target = $region52
        $region51: #{tpu_custom_call.1} parent=11 // pred_region
          _
        $region52: #{tpu_custom_call.1} parent=11 // pred_fallthru
          _
        // Predicated region
        $region53: #{tpu_custom_call.1} parent=11 // pred_check
          %p473 = pneg %p287
        $region54: #{tpu_custom_call.1} parent=11 // pred_check_branch
          %475 = sbr.rel (%p473) target = $region56
        $region55: #{tpu_custom_call.1} parent=11 // pred_region
          %s477 = ssub.s32 256, 256
          %478 = vsyncadd [#allocation6], %s477
          %s479 = sshll.u32 [#allocation7], 4
          %s480 = int_to_ptr.vmem [resolvable:$true] %s479
          %485 = dma.hbm_to_vmem [thread:$0]  %s11, 256, %s480, [#allocation6], 64, 64, 4
        $region56: #{tpu_custom_call.1} parent=11 // pred_fallthru
          _
        // Predicated region
        $region57: #{tpu_custom_call.1} parent=11 // pred_check
          %p486 = pneg %p308
        $region58: #{tpu_custom_call.1} parent=11 // pred_check_branch
          %488 = sbr.rel (%p486) target = $region60
        $region59: #{tpu_custom_call.1} parent=11 // pred_region
          _
        $region60: #{tpu_custom_call.1} parent=11 // pred_fallthru
          _
        // Predicated region
        $region61: #{tpu_custom_call.1} parent=11 // pred_check
          %p489 = pneg %p329
        $region62: #{tpu_custom_call.1} parent=11 // pred_check_branch
          %491 = sbr.rel (%p489) target = $region64
        $region63: #{tpu_custom_call.1} parent=11 // pred_region
          _
        $region64: #{tpu_custom_call.1} parent=11 // pred_fallthru
          _
        // Predicated region
        $region65: #{tpu_custom_call.1} parent=11 // pred_check
          %p492 = pneg %p350
        $region66: #{tpu_custom_call.1} parent=11 // pred_check_branch
          %494 = sbr.rel (%p492) target = $region68
        $region67: #{tpu_custom_call.1} parent=11 // pred_region
          _
        $region68: #{tpu_custom_call.1} parent=11 // pred_fallthru
          _
        // Predicated region
        $region69: #{tpu_custom_call.1} parent=11 // pred_check
          %p495 = pneg %p371
        $region70: #{tpu_custom_call.1} parent=11 // pred_check_branch
          %497 = sbr.rel (%p495) target = $region72
        $region71: #{tpu_custom_call.1} parent=11 // pred_region
          _
        $region72: #{tpu_custom_call.1} parent=11 // pred_fallthru
          _
        // Predicated region
        $region73: #{tpu_custom_call.1} parent=11 // pred_check
          %p498 = pneg %p392
        $region74: #{tpu_custom_call.1} parent=11 // pred_check_branch
          %500 = sbr.rel (%p498) target = $region76
        $region75: #{tpu_custom_call.1} parent=11 // pred_region
          _
        $region76: #{tpu_custom_call.1} parent=11 // pred_fallthru
          _
      $region12: #{tpu_custom_call.1} parent=5 // pred_fallthru
        _
      %p501 = scmp.lt.s32.totalorder %s30, 2
      // Predicated region
      $region77: #{tpu_custom_call.1} parent=5 // pred_check
        %p502 = pneg %p501
      $region78: #{tpu_custom_call.1} parent=5 // pred_check_branch
        %504 = sbr.rel (%p502) target = $region80
      $region79: #{tpu_custom_call.1} parent=5 // pred_region
        // Predicated region
        $region81: #{tpu_custom_call.1} parent=79 // pred_check
          %p505 = pneg %p50
        $region82: #{tpu_custom_call.1} parent=79 // pred_check_branch
          %507 = sbr.rel (%p505) target = $region84
        $region83: #{tpu_custom_call.1} parent=79 // pred_region
          %s508 = sand.u32 %s40, 1
          %s509 = scalar_lea.sflag [#allocation3], %s508
          %s510 = sand.u32 %s40, 1
          %s511 = smul.addr %s510, 32
          %s512 = scalar_lea.vmem [#allocation2], %s511
          %s513 = smul.u32 2, %s30
          %s515 = ssub.s32 512, 512
          %516 = vsyncadd %s509, %s515
          %s517 = smul.addr %s513, 2
          %s518 = smul.addr %s517, 128
          %s519 = scalar_lea.hbm %s0, %s518
          %s520 = sshll.u32 %s512, 4
          %s521 = int_to_ptr.vmem [resolvable:$true] %s520
          %526 = dma.hbm_to_vmem [thread:$0]  %s519, 512, %s521, %s509, 128, 128, 8
        $region84: #{tpu_custom_call.1} parent=79 // pred_fallthru
          _
      $region80: #{tpu_custom_call.1} parent=5 // pred_fallthru
        _
      %p527 = scmp.le.s32.totalorder 1, %s30
      %p528 = scmp.lt.s32.totalorder %s30, 3
      %p529 = pnand %p527, %p528
      %p530 = pneg %p529
      // Predicated region
      $region85: #{tpu_custom_call.1} parent=5 // pred_check
        _
      $region86: #{tpu_custom_call.1} parent=5 // pred_check_branch
        %532 = sbr.rel (%p529) target = $region88
      $region87: #{tpu_custom_call.1} parent=5 // pred_region
        %s533 = ssub.s32 %s30, 1
        %s534 = sand.u32 %s43, 1
        %s535 = scalar_lea.sflag [#allocation3], %s534
        %s536 = sand.u32 %s43, 1
        %s537 = smul.addr %s536, 32
        %s538 = scalar_lea.vmem [#allocation2], %s537
        // Predicated region
        $region89: #{tpu_custom_call.1} parent=87 // pred_check
          %p539 = pneg %p56
        $region90: #{tpu_custom_call.1} parent=87 // pred_check_branch
          %541 = sbr.rel (%p539) target = $region92
        $region91: #{tpu_custom_call.1} parent=87 // pred_region
          %542 = dma.done %s535, 512
        $region92: #{tpu_custom_call.1} parent=87 // pred_fallthru
          _
        // Predicated region
        $region93: #{tpu_custom_call.1} parent=87 // pred_check
          %p543 = pneg %p203
        $region94: #{tpu_custom_call.1} parent=87 // pred_check_branch
          %545 = sbr.rel (%p543) target = $region96
        $region95: #{tpu_custom_call.1} parent=87 // pred_region
          %546 = dma.done [#allocation6], 256
        $region96: #{tpu_custom_call.1} parent=87 // pred_fallthru
          _
        // Predicated region
        $region97: #{tpu_custom_call.1} parent=87 // pred_check
          %p547 = pneg %p287
        $region98: #{tpu_custom_call.1} parent=87 // pred_check_branch
          %549 = sbr.rel (%p547) target = $region100
        $region99: #{tpu_custom_call.1} parent=87 // pred_region
          %550 = dma.done [#allocation6], 256
        $region100: #{tpu_custom_call.1} parent=87 // pred_fallthru
          _
        %s551 = sand.u32 %s43, 1
        %s552 = scalar_lea.sflag [#allocation3], %s551
        %s553 = sand.u32 %s43, 1
        %s554 = smul.addr %s553, 32
        %s555 = scalar_lea.vmem [#allocation2], %s554
        %p556 = pneg %p56
        %p557 = pneg %p53
        %p558 = pneg %p77
        %p559 = pneg %p74
        %p560 = pneg %p98
        %p561 = pneg %p95
        %p562 = pneg %p119
        %p563 = pneg %p116
        %p564 = pneg %p140
        %p565 = pneg %p137
        %p566 = pneg %p161
        %p567 = pneg %p158
        %p568 = pneg %p182
        %p569 = pneg %p179
        %p570 = pneg %p203
        %p571 = pneg %p200
        %p572 = pneg %p224
        %p573 = pneg %p221
        %p574 = pneg %p245
        %p575 = pneg %p242
        %p576 = pneg %p266
        %p577 = pneg %p263
        %p578 = pneg %p287
        %p579 = pneg %p284
        %p580 = pneg %p308
        %p581 = pneg %p305
        %p582 = pneg %p329
        %p583 = pneg %p326
        %p584 = pneg %p350
        %p585 = pneg %p347
        %p586 = pneg %p371
        %p587 = pneg %p368
        %p588 = pneg %p392
        %p589 = pneg %p389
        %p590 = pneg %p418
        %p591 = pneg %p415
        %s592 = sand.u32 %s405, 1
        %s593 = scalar_lea.sflag [#allocation4], %s592
        %s594 = sand.u32 %s405, 1
        %s595 = smul.addr %s594, 32
        %s596 = scalar_lea.vmem [#allocation8], %s595
        %s597 = smul.u32 2, %s35
        %s598 = smul.u32 2, %s35
        %v600 = vld [vmem:[%s538] sm:$0xff]
        %v601 = vld [vmem:[%s538 + $0x8] sm:$0xff]
        %v602 = vld [vmem:[%s538 + $0x10] sm:$0xff]
        %v603 = vld [vmem:[%s538 + $0x18] sm:$0xff]
        %v604 = vpack.c.bf16 %v601, %v600
        %v605 = vpack.c.bf16 %v603, %v602
        %v606 = vld [vmem:[%s1] sm:$0xf]
        %v607 = vld [vmem:[%s1 + $0x4] sm:$0xf]
        %v608 = vld [vmem:[%s1 + $0x8] sm:$0xf]
        %v609 = vld [vmem:[%s1 + $0xc] sm:$0xf]
        %v610 = vld [vmem:[%s2] sm:$0x1]
        %v612 = vlaneseq
        %v613 = vshrl.u32 %v612, 7
        %v614 = vsub.s32 0, %v613
        %v615 = vrot.slane %v610, %v614
        %v621 = vunpack.c.l.b16 %v606
        %v622 = vunpack.c.l.b16 %v607
        %v623 = vunpack.c.l.b16 %v608
        %v624 = vunpack.c.l.b16 %v609
        %v625 = vpack.c.b16 %v622, %v621
        %v626 = vpack.c.b16 %v624, %v623
        %vm629 = vcmask 261120
        %v631 = vsel %vm629, %v604, 0
        %v634 = vsel %vm629, %v605, 0
        %636 = vmatprep.subr.bf16.mxu0 0
        %637 = vmatpush1.bf16.msra.mxu0 0
        %638 = vmatprep.subr.bf16.mxu0 0
        %639 = vmatpush1.bf16.msra.mxu0 0
        %640 = vmatprep.subr.bf16.mxu0 0
        %641 = vmatpush1.bf16.msra.mxu0 0
        %642 = vmatprep.subr.bf16.mxu0 0
        %643 = vmatpush1.bf16.msra.mxu0 0
        %644 = vmatprep.subr.bf16.mxu0 0
        %645 = vmatpush1.bf16.msra.mxu0 0
        %646 = vmatprep.subr.bf16.mxu0 0
        %647 = vmatpush1.bf16.msra.mxu0 0
        %648 = vmatprep.subr.bf16.mxu0 0
        %649 = vmatpush1.bf16.msra.mxu0 %v626
        %650 = vmatprep.subr.bf16.mxu0 0
        %651 = vmatpush1.bf16.msra.mxu0 %v625
        %652 = vmatprep.subr.bf16.mxu0 0
        %653 = vmatpush2.bf16.msra.mxu0 0
        %654 = vmatprep.subr.bf16.mxu0 0
        %655 = vmatpush2.bf16.msra.mxu0 0
        %656 = vmatprep.subr.bf16.mxu0 0
        %657 = vmatpush2.bf16.msra.mxu0 0
        %658 = vmatprep.subr.bf16.mxu0 0
        %659 = vmatpush2.bf16.msra.mxu0 0
        %660 = vmatprep.subr.bf16.mxu0 0
        %661 = vmatpush2.bf16.msra.mxu0 0
        %662 = vmatprep.subr.bf16.mxu0 0
        %663 = vmatpush2.bf16.msra.mxu0 0
        %664 = vmatprep.subr.bf16.mxu0 0
        %665 = vmatpush2.bf16.msra.mxu0 0
        %666 = vmatprep.subr.bf16.mxu0 0
        %667 = vmatpush2.bf16.msra.mxu0 0
        %668 = vmatprep.mubr.bf16.mxu0 0
        %669 = vmatmul.mubr.bf16.gmra.mxu0 %v631
        %v670 = vpop.f32.mrf.mxu0
        %v671 = vadd.f32 %v615, %v670
        %v672 = vpop.f32.mrf.mxu0
        %v673 = vpop.f32.mrf.mxu0
        %v674 = vadd.f32 %v615, %v673
        %v675 = vpop.f32.mrf.mxu0
        %676 = vmatprep.mubr.bf16.mxu0 0
        %677 = vmatmul.mubr.bf16.gmra.mxu0 %v634
        %v678 = vpop.f32.mrf.mxu0
        %v679 = vadd.f32 %v615, %v678
        %v680 = vpop.f32.mrf.mxu0
        %v681 = vpop.f32.mrf.mxu0
        %v682 = vadd.f32 %v615, %v681
        %v683 = vpop.f32.mrf.mxu0
        %684 = vdwg.mxu0
        %v685 = vld [vmem:[%s3] sm:$0xf]
        %v686 = vld [vmem:[%s3 + $0x4] sm:$0xf]
        %v687 = vld [vmem:[%s3 + $0x8] sm:$0xf]
        %v688 = vld [vmem:[%s3 + $0xc] sm:$0xf]
        %v689 = vld [vmem:[%s4] sm:$0x1]
        %v691 = vlaneseq
        %v692 = vshrl.u32 %v691, 7
        %v693 = vsub.s32 0, %v692
        %v694 = vrot.slane %v689, %v693
        %v700 = vunpack.c.l.b16 %v685
        %v701 = vunpack.c.l.b16 %v686
        %v702 = vunpack.c.l.b16 %v687
        %v703 = vunpack.c.l.b16 %v688
        %v704 = vpack.c.b16 %v701, %v700
        %v705 = vpack.c.b16 %v703, %v702
        %708 = vmatprep.subr.bf16.mxu0 0
        %709 = vmatpush1.bf16.msra.mxu0 0
        %710 = vmatprep.subr.bf16.mxu0 0
        %711 = vmatpush1.bf16.msra.mxu0 0
        %712 = vmatprep.subr.bf16.mxu0 0
        %713 = vmatpush1.bf16.msra.mxu0 0
        %714 = vmatprep.subr.bf16.mxu0 0
        %715 = vmatpush1.bf16.msra.mxu0 0
        %716 = vmatprep.subr.bf16.mxu0 0
        %717 = vmatpush1.bf16.msra.mxu0 0
        %718 = vmatprep.subr.bf16.mxu0 0
        %719 = vmatpush1.bf16.msra.mxu0 0
        %720 = vmatprep.subr.bf16.mxu0 0
        %721 = vmatpush1.bf16.msra.mxu0 %v705
        %722 = vmatprep.subr.bf16.mxu0 0
        %723 = vmatpush1.bf16.msra.mxu0 %v704
        %724 = vmatprep.subr.bf16.mxu0 0
        %725 = vmatpush2.bf16.msra.mxu0 0
        %726 = vmatprep.subr.bf16.mxu0 0
        %727 = vmatpush2.bf16.msra.mxu0 0
        %728 = vmatprep.subr.bf16.mxu0 0
        %729 = vmatpush2.bf16.msra.mxu0 0
        %730 = vmatprep.subr.bf16.mxu0 0
        %731 = vmatpush2.bf16.msra.mxu0 0
        %732 = vmatprep.subr.bf16.mxu0 0
        %733 = vmatpush2.bf16.msra.mxu0 0
        %734 = vmatprep.subr.bf16.mxu0 0
        %735 = vmatpush2.bf16.msra.mxu0 0
        %736 = vmatprep.subr.bf16.mxu0 0
        %737 = vmatpush2.bf16.msra.mxu0 0
        %738 = vmatprep.subr.bf16.mxu0 0
        %739 = vmatpush2.bf16.msra.mxu0 0
        %740 = vmatprep.mubr.bf16.mxu0 0
        %741 = vmatmul.mubr.bf16.gmra.mxu0 %v631
        %v742 = vpop.f32.mrf.mxu0
        %v743 = vadd.f32 %v694, %v742
        %v744 = vpop.f32.mrf.mxu0
        %v745 = vpop.f32.mrf.mxu0
        %v746 = vadd.f32 %v694, %v745
        %v747 = vpop.f32.mrf.mxu0
        %748 = vmatprep.mubr.bf16.mxu0 0
        %749 = vmatmul.mubr.bf16.gmra.mxu0 %v634
        %v750 = vpop.f32.mrf.mxu0
        %v751 = vadd.f32 %v694, %v750
        %v752 = vpop.f32.mrf.mxu0
        %v753 = vpop.f32.mrf.mxu0
        %v754 = vadd.f32 %v694, %v753
        %v755 = vpop.f32.mrf.mxu0
        %756 = vdwg.mxu0
        %v757 = vld [vmem:[%s5] sm:$0xf]
        %v758 = vld [vmem:[%s5 + $0x4] sm:$0xf]
        %v759 = vld [vmem:[%s5 + $0x8] sm:$0xf]
        %v760 = vld [vmem:[%s5 + $0xc] sm:$0xf]
        %v761 = vld [vmem:[%s6] sm:$0x1]
        %v763 = vlaneseq
        %v764 = vshrl.u32 %v763, 7
        %v765 = vsub.s32 0, %v764
        %v766 = vrot.slane %v761, %v765
        %v772 = vunpack.c.l.b16 %v757
        %v773 = vunpack.c.l.b16 %v758
        %v774 = vunpack.c.l.b16 %v759
        %v775 = vunpack.c.l.b16 %v760
        %v776 = vpack.c.b16 %v773, %v772
        %v777 = vpack.c.b16 %v775, %v774
        %780 = vmatprep.subr.bf16.mxu0 0
        %781 = vmatpush1.bf16.msra.mxu0 0
        %782 = vmatprep.subr.bf16.mxu0 0
        %783 = vmatpush1.bf16.msra.mxu0 0
        %784 = vmatprep.subr.bf16.mxu0 0
        %785 = vmatpush1.bf16.msra.mxu0 0
        %786 = vmatprep.subr.bf16.mxu0 0
        %787 = vmatpush1.bf16.msra.mxu0 0
        %788 = vmatprep.subr.bf16.mxu0 0
        %789 = vmatpush1.bf16.msra.mxu0 0
        %790 = vmatprep.subr.bf16.mxu0 0
        %791 = vmatpush1.bf16.msra.mxu0 0
        %792 = vmatprep.subr.bf16.mxu0 0
        %793 = vmatpush1.bf16.msra.mxu0 %v777
        %794 = vmatprep.subr.bf16.mxu0 0
        %795 = vmatpush1.bf16.msra.mxu0 %v776
        %796 = vmatprep.subr.bf16.mxu0 0
        %797 = vmatpush2.bf16.msra.mxu0 0
        %798 = vmatprep.subr.bf16.mxu0 0
        %799 = vmatpush2.bf16.msra.mxu0 0
        %800 = vmatprep.subr.bf16.mxu0 0
        %801 = vmatpush2.bf16.msra.mxu0 0
        %802 = vmatprep.subr.bf16.mxu0 0
        %803 = vmatpush2.bf16.msra.mxu0 0
        %804 = vmatprep.subr.bf16.mxu0 0
        %805 = vmatpush2.bf16.msra.mxu0 0
        %806 = vmatprep.subr.bf16.mxu0 0
        %807 = vmatpush2.bf16.msra.mxu0 0
        %808 = vmatprep.subr.bf16.mxu0 0
        %809 = vmatpush2.bf16.msra.mxu0 0
        %810 = vmatprep.subr.bf16.mxu0 0
        %811 = vmatpush2.bf16.msra.mxu0 0
        %812 = vmatprep.mubr.bf16.mxu0 0
        %813 = vmatmul.mubr.bf16.gmra.mxu0 %v631
        %v814 = vpop.f32.mrf.mxu0
        %v815 = vadd.f32 %v766, %v814
        %v816 = vpop.f32.mrf.mxu0
        %v817 = vpop.f32.mrf.mxu0
        %v818 = vadd.f32 %v766, %v817
        %v819 = vpop.f32.mrf.mxu0
        %820 = vmatprep.mubr.bf16.mxu0 0
        %821 = vmatmul.mubr.bf16.gmra.mxu0 %v634
        %v822 = vpop.f32.mrf.mxu0
        %v823 = vadd.f32 %v766, %v822
        %v824 = vpop.f32.mrf.mxu0
        %v825 = vpop.f32.mrf.mxu0
        %v826 = vadd.f32 %v766, %v825
        %v827 = vpop.f32.mrf.mxu0
        %828 = vdwg.mxu0
        %833 = vrot.lane.b32.xlu0 %v671, 120
        %v834 = vpop.permute.xlu0 %833
        %835 = vrot.lane.b32.xlu0 %v674, 120
        %v836 = vpop.permute.xlu0 %835
        %837 = vrot.lane.b32.xlu0 %v679, 120
        %v838 = vpop.permute.xlu0 %837
        %839 = vrot.lane.b32.xlu0 %v682, 120
        %v840 = vpop.permute.xlu0 %839
        %845 = vrot.lane.b32.xlu0 %v671, 112
        %v846 = vpop.permute.xlu0 %845
        %847 = vrot.lane.b32.xlu0 %v674, 112
        %v848 = vpop.permute.xlu0 %847
        %849 = vrot.lane.b32.xlu0 %v679, 112
        %v850 = vpop.permute.xlu0 %849
        %851 = vrot.lane.b32.xlu0 %v682, 112
        %v852 = vpop.permute.xlu0 %851
        %857 = vrot.lane.b32.xlu0 %v671, 104
        %v858 = vpop.permute.xlu0 %857
        %859 = vrot.lane.b32.xlu0 %v674, 104
        %v860 = vpop.permute.xlu0 %859
        %861 = vrot.lane.b32.xlu0 %v679, 104
        %v862 = vpop.permute.xlu0 %861
        %863 = vrot.lane.b32.xlu0 %v682, 104
        %v864 = vpop.permute.xlu0 %863
        %v869 = vpack.c.bf16 %v674, %v671
        %v870 = vpack.c.bf16 %v682, %v679
        %v871 = vpack.c.bf16 %v836, %v834
        %v872 = vpack.c.bf16 %v840, %v838
        %v873 = vpack.c.bf16 %v848, %v846
        %v874 = vpack.c.bf16 %v852, %v850
        %v875 = vpack.c.bf16 %v860, %v858
        %v876 = vpack.c.bf16 %v864, %v862
        %881 = vrot.lane.b32.xlu0 %v743, 120
        %v882 = vpop.permute.xlu0 %881
        %883 = vrot.lane.b32.xlu0 %v746, 120
        %v884 = vpop.permute.xlu0 %883
        %885 = vrot.lane.b32.xlu0 %v751, 120
        %v886 = vpop.permute.xlu0 %885
        %887 = vrot.lane.b32.xlu0 %v754, 120
        %v888 = vpop.permute.xlu0 %887
        %893 = vrot.lane.b32.xlu0 %v743, 112
        %v894 = vpop.permute.xlu0 %893
        %895 = vrot.lane.b32.xlu0 %v746, 112
        %v896 = vpop.permute.xlu0 %895
        %897 = vrot.lane.b32.xlu0 %v751, 112
        %v898 = vpop.permute.xlu0 %897
        %899 = vrot.lane.b32.xlu0 %v754, 112
        %v900 = vpop.permute.xlu0 %899
        %905 = vrot.lane.b32.xlu0 %v743, 104
        %v906 = vpop.permute.xlu0 %905
        %907 = vrot.lane.b32.xlu0 %v746, 104
        %v908 = vpop.permute.xlu0 %907
        %909 = vrot.lane.b32.xlu0 %v751, 104
        %v910 = vpop.permute.xlu0 %909
        %911 = vrot.lane.b32.xlu0 %v754, 104
        %v912 = vpop.permute.xlu0 %911
        %v917 = vpack.c.bf16 %v746, %v743
        %v918 = vpack.c.bf16 %v754, %v751
        %v919 = vpack.c.bf16 %v884, %v882
        %v920 = vpack.c.bf16 %v888, %v886
        %v921 = vpack.c.bf16 %v896, %v894
        %v922 = vpack.c.bf16 %v900, %v898
        %v923 = vpack.c.bf16 %v908, %v906
        %v924 = vpack.c.bf16 %v912, %v910
        %929 = vrot.lane.b32.xlu0 %v815, 120
        %v930 = vpop.permute.xlu0 %929
        %931 = vrot.lane.b32.xlu0 %v818, 120
        %v932 = vpop.permute.xlu0 %931
        %933 = vrot.lane.b32.xlu0 %v823, 120
        %v934 = vpop.permute.xlu0 %933
        %935 = vrot.lane.b32.xlu0 %v826, 120
        %v936 = vpop.permute.xlu0 %935
        %941 = vrot.lane.b32.xlu0 %v815, 112
        %v942 = vpop.permute.xlu0 %941
        %943 = vrot.lane.b32.xlu0 %v818, 112
        %v944 = vpop.permute.xlu0 %943
        %945 = vrot.lane.b32.xlu0 %v823, 112
        %v946 = vpop.permute.xlu0 %945
        %947 = vrot.lane.b32.xlu0 %v826, 112
        %v948 = vpop.permute.xlu0 %947
        %953 = vrot.lane.b32.xlu0 %v815, 104
        %v954 = vpop.permute.xlu0 %953
        %955 = vrot.lane.b32.xlu0 %v818, 104
        %v956 = vpop.permute.xlu0 %955
        %957 = vrot.lane.b32.xlu0 %v823, 104
        %v958 = vpop.permute.xlu0 %957
        %959 = vrot.lane.b32.xlu0 %v826, 104
        %v960 = vpop.permute.xlu0 %959
        %v965 = vpack.c.bf16 %v818, %v815
        %v966 = vpack.c.bf16 %v826, %v823
        %v967 = vpack.c.bf16 %v932, %v930
        %v968 = vpack.c.bf16 %v936, %v934
        %v969 = vpack.c.bf16 %v944, %v942
        %v970 = vpack.c.bf16 %v948, %v946
        %v971 = vpack.c.bf16 %v956, %v954
        %v972 = vpack.c.bf16 %v960, %v958
        %vm973 = vcmask 64512
        %v975 = vsel %vm973, %v869, 0
        %v978 = vsel %vm973, %v917, 0
        %980 = vmatprep.subr.bf16.mxu0 0
        %981 = vmatpush1.bf16.xpose.msra.mxu0 0
        %982 = vmatprep.subr.bf16.mxu0 0
        %983 = vmatpush1.bf16.xpose.msra.mxu0 0
        %984 = vmatprep.subr.bf16.mxu0 0
        %985 = vmatpush1.bf16.xpose.msra.mxu0 0
        %986 = vmatprep.subr.bf16.mxu0 0
        %987 = vmatpush1.bf16.xpose.msra.mxu0 0
        %988 = vmatprep.subr.bf16.mxu0 0
        %989 = vmatpush1.bf16.xpose.msra.mxu0 0
        %990 = vmatprep.subr.bf16.mxu0 0
        %991 = vmatpush1.bf16.xpose.msra.mxu0 0
        %992 = vmatprep.subr.bf16.mxu0 0
        %993 = vmatpush1.bf16.xpose.msra.mxu0 0
        %994 = vmatprep.subr.bf16.mxu0 0
        %995 = vmatpush1.bf16.xpose.msra.mxu0 %v978
        %996 = vmatprep.subr.bf16.mxu0 0
        %997 = vmatpush2.bf16.xpose.msra.mxu0 0
        %998 = vmatprep.subr.bf16.mxu0 0
        %999 = vmatpush2.bf16.xpose.msra.mxu0 0
        %1000 = vmatprep.subr.bf16.mxu0 0
        %1001 = vmatpush2.bf16.xpose.msra.mxu0 0
        %1002 = vmatprep.subr.bf16.mxu0 0
        %1003 = vmatpush2.bf16.xpose.msra.mxu0 0
        %1004 = vmatprep.subr.bf16.mxu0 0
        %1005 = vmatpush2.bf16.xpose.msra.mxu0 0
        %1006 = vmatprep.subr.bf16.mxu0 0
        %1007 = vmatpush2.bf16.xpose.msra.mxu0 0
        %1008 = vmatprep.subr.bf16.mxu0 0
        %1009 = vmatpush2.bf16.xpose.msra.mxu0 0
        %1010 = vmatprep.subr.bf16.mxu0 0
        %1011 = vmatpush2.bf16.xpose.msra.mxu0 0
        %1012 = vmatprep.mubr.bf16.mxu0 0
        %1013 = vmatmul.mubr.bf16.gmra.mxu0 %v975
        %v1014 = vpop.f32.mrf.mxu0
        %v1015 = vadd.f32 0.0, %v1014
        %v1016 = vpop.f32.mrf.mxu0
        %v1017 = vpop.f32.mrf.mxu0
        %v1018 = vadd.f32 0.0, %v1017
        %v1019 = vpop.f32.mrf.mxu0
        %1020 = vdwg.mxu0
        %v1022 = vsel %vm973, %v870, 0
        %v1025 = vsel %vm973, %v918, 0
        %1027 = vmatprep.subr.bf16.mxu0 0
        %1028 = vmatpush1.bf16.xpose.msra.mxu0 0
        %1029 = vmatprep.subr.bf16.mxu0 0
        %1030 = vmatpush1.bf16.xpose.msra.mxu0 0
        %1031 = vmatprep.subr.bf16.mxu0 0
        %1032 = vmatpush1.bf16.xpose.msra.mxu0 0
        %1033 = vmatprep.subr.bf16.mxu0 0
        %1034 = vmatpush1.bf16.xpose.msra.mxu0 0
        %1035 = vmatprep.subr.bf16.mxu0 0
        %1036 = vmatpush1.bf16.xpose.msra.mxu0 0
        %1037 = vmatprep.subr.bf16.mxu0 0
        %1038 = vmatpush1.bf16.xpose.msra.mxu0 0
        %1039 = vmatprep.subr.bf16.mxu0 0
        %1040 = vmatpush1.bf16.xpose.msra.mxu0 0
        %1041 = vmatprep.subr.bf16.mxu0 0
        %1042 = vmatpush1.bf16.xpose.msra.mxu0 %v1025
        %1043 = vmatprep.subr.bf16.mxu0 0
        %1044 = vmatpush2.bf16.xpose.msra.mxu0 0
        %1045 = vmatprep.subr.bf16.mxu0 0
        %1046 = vmatpush2.bf16.xpose.msra.mxu0 0
        %1047 = vmatprep.subr.bf16.mxu0 0
        %1048 = vmatpush2.bf16.xpose.msra.mxu0 0
        %1049 = vmatprep.subr.bf16.mxu0 0
        %1050 = vmatpush2.bf16.xpose.msra.mxu0 0
        %1051 = vmatprep.subr.bf16.mxu0 0
        %1052 = vmatpush2.bf16.xpose.msra.mxu0 0
        %1053 = vmatprep.subr.bf16.mxu0 0
        %1054 = vmatpush2.bf16.xpose.msra.mxu0 0
        %1055 = vmatprep.subr.bf16.mxu0 0
        %1056 = vmatpush2.bf16.xpose.msra.mxu0 0
        %1057 = vmatprep.subr.bf16.mxu0 0
        %1058 = vmatpush2.bf16.xpose.msra.mxu0 0
        %1059 = vmatprep.mubr.bf16.mxu0 0
        %1060 = vmatmul.mubr.bf16.gmra.mxu0 %v1022
        %v1061 = vpop.f32.mrf.mxu0
        %v1062 = vadd.f32 0.0, %v1061
        %v1063 = vpop.f32.mrf.mxu0
        %v1064 = vpop.f32.mrf.mxu0
        %v1065 = vadd.f32 0.0, %v1064
        %v1066 = vpop.f32.mrf.mxu0
        %1067 = vdwg.mxu0
        %v1069 = vsel %vm973, %v871, 0
        %v1072 = vsel %vm973, %v919, 0
        %1074 = vmatprep.subr.bf16.mxu0 0
        %1075 = vmatpush1.bf16.xpose.msra.mxu0 0
        %1076 = vmatprep.subr.bf16.mxu0 0
        %1077 = vmatpush1.bf16.xpose.msra.mxu0 0
        %1078 = vmatprep.subr.bf16.mxu0 0
        %1079 = vmatpush1.bf16.xpose.msra.mxu0 0
        %1080 = vmatprep.subr.bf16.mxu0 0
        %1081 = vmatpush1.bf16.xpose.msra.mxu0 0
        %1082 = vmatprep.subr.bf16.mxu0 0
        %1083 = vmatpush1.bf16.xpose.msra.mxu0 0
        %1084 = vmatprep.subr.bf16.mxu0 0
        %1085 = vmatpush1.bf16.xpose.msra.mxu0 0
        %1086 = vmatprep.subr.bf16.mxu0 0
        %1087 = vmatpush1.bf16.xpose.msra.mxu0 0
        %1088 = vmatprep.subr.bf16.mxu0 0
        %1089 = vmatpush1.bf16.xpose.msra.mxu0 %v1072
        %1090 = vmatprep.subr.bf16.mxu0 0
        %1091 = vmatpush2.bf16.xpose.msra.mxu0 0
        %1092 = vmatprep.subr.bf16.mxu0 0
        %1093 = vmatpush2.bf16.xpose.msra.mxu0 0
        %1094 = vmatprep.subr.bf16.mxu0 0
        %1095 = vmatpush2.bf16.xpose.msra.mxu0 0
        %1096 = vmatprep.subr.bf16.mxu0 0
        %1097 = vmatpush2.bf16.xpose.msra.mxu0 0
        %1098 = vmatprep.subr.bf16.mxu0 0
        %1099 = vmatpush2.bf16.xpose.msra.mxu0 0
        %1100 = vmatprep.subr.bf16.mxu0 0
        %1101 = vmatpush2.bf16.xpose.msra.mxu0 0
        %1102 = vmatprep.subr.bf16.mxu0 0
        %1103 = vmatpush2.bf16.xpose.msra.mxu0 0
        %1104 = vmatprep.subr.bf16.mxu0 0
        %1105 = vmatpush2.bf16.xpose.msra.mxu0 0
        %1106 = vmatprep.mubr.bf16.mxu0 0
        %1107 = vmatmul.mubr.bf16.gmra.mxu0 %v1069
        %v1108 = vpop.f32.mrf.mxu0
        %v1109 = vadd.f32 0.0, %v1108
        %v1110 = vpop.f32.mrf.mxu0
        %v1111 = vpop.f32.mrf.mxu0
        %v1112 = vadd.f32 0.0, %v1111
        %v1113 = vpop.f32.mrf.mxu0
        %1114 = vdwg.mxu0
        %v1116 = vsel %vm973, %v872, 0
        %v1119 = vsel %vm973, %v920, 0
        %1121 = vmatprep.subr.bf16.mxu0 0
        %1122 = vmatpush1.bf16.xpose.msra.mxu0 0
        %1123 = vmatprep.subr.bf16.mxu0 0
        %1124 = vmatpush1.bf16.xpose.msra.mxu0 0
        %1125 = vmatprep.subr.bf16.mxu0 0
        %1126 = vmatpush1.bf16.xpose.msra.mxu0 0
        %1127 = vmatprep.subr.bf16.mxu0 0
        %1128 = vmatpush1.bf16.xpose.msra.mxu0 0
        %1129 = vmatprep.subr.bf16.mxu0 0
        %1130 = vmatpush1.bf16.xpose.msra.mxu0 0
        %1131 = vmatprep.subr.bf16.mxu0 0
        %1132 = vmatpush1.bf16.xpose.msra.mxu0 0
        %1133 = vmatprep.subr.bf16.mxu0 0
        %1134 = vmatpush1.bf16.xpose.msra.mxu0 0
        %1135 = vmatprep.subr.bf16.mxu0 0
        %1136 = vmatpush1.bf16.xpose.msra.mxu0 %v1119
        %1137 = vmatprep.subr.bf16.mxu0 0
        %1138 = vmatpush2.bf16.xpose.msra.mxu0 0
        %1139 = vmatprep.subr.bf16.mxu0 0
        %1140 = vmatpush2.bf16.xpose.msra.mxu0 0
        %1141 = vmatprep.subr.bf16.mxu0 0
        %1142 = vmatpush2.bf16.xpose.msra.mxu0 0
        %1143 = vmatprep.subr.bf16.mxu0 0
        %1144 = vmatpush2.bf16.xpose.msra.mxu0 0
        %1145 = vmatprep.subr.bf16.mxu0 0
        %1146 = vmatpush2.bf16.xpose.msra.mxu0 0
        %1147 = vmatprep.subr.bf16.mxu0 0
        %1148 = vmatpush2.bf16.xpose.msra.mxu0 0
        %1149 = vmatprep.subr.bf16.mxu0 0
        %1150 = vmatpush2.bf16.xpose.msra.mxu0 0
        %1151 = vmatprep.subr.bf16.mxu0 0
        %1152 = vmatpush2.bf16.xpose.msra.mxu0 0
        %1153 = vmatprep.mubr.bf16.mxu0 0
        %1154 = vmatmul.mubr.bf16.gmra.mxu0 %v1116
        %v1155 = vpop.f32.mrf.mxu0
        %v1156 = vadd.f32 0.0, %v1155
        %v1157 = vpop.f32.mrf.mxu0
        %v1158 = vpop.f32.mrf.mxu0
        %v1159 = vadd.f32 0.0, %v1158
        %v1160 = vpop.f32.mrf.mxu0
        %1161 = vdwg.mxu0
        %v1163 = vsel %vm973, %v873, 0
        %v1166 = vsel %vm973, %v921, 0
        %1168 = vmatprep.subr.bf16.mxu0 0
        %1169 = vmatpush1.bf16.xpose.msra.mxu0 0
        %1170 = vmatprep.subr.bf16.mxu0 0
        %1171 = vmatpush1.bf16.xpose.msra.mxu0 0
        %1172 = vmatprep.subr.bf16.mxu0 0
        %1173 = vmatpush1.bf16.xpose.msra.mxu0 0
        %1174 = vmatprep.subr.bf16.mxu0 0
        %1175 = vmatpush1.bf16.xpose.msra.mxu0 0
        %1176 = vmatprep.subr.bf16.mxu0 0
        %1177 = vmatpush1.bf16.xpose.msra.mxu0 0
        %1178 = vmatprep.subr.bf16.mxu0 0
        %1179 = vmatpush1.bf16.xpose.msra.mxu0 0
        %1180 = vmatprep.subr.bf16.mxu0 0
        %1181 = vmatpush1.bf16.xpose.msra.mxu0 0
        %1182 = vmatprep.subr.bf16.mxu0 0
        %1183 = vmatpush1.bf16.xpose.msra.mxu0 %v1166
        %1184 = vmatprep.subr.bf16.mxu0 0
        %1185 = vmatpush2.bf16.xpose.msra.mxu0 0
        %1186 = vmatprep.subr.bf16.mxu0 0
        %1187 = vmatpush2.bf16.xpose.msra.mxu0 0
        %1188 = vmatprep.subr.bf16.mxu0 0
        %1189 = vmatpush2.bf16.xpose.msra.mxu0 0
        %1190 = vmatprep.subr.bf16.mxu0 0
        %1191 = vmatpush2.bf16.xpose.msra.mxu0 0
        %1192 = vmatprep.subr.bf16.mxu0 0
        %1193 = vmatpush2.bf16.xpose.msra.mxu0 0
        %1194 = vmatprep.subr.bf16.mxu0 0
        %1195 = vmatpush2.bf16.xpose.msra.mxu0 0
        %1196 = vmatprep.subr.bf16.mxu0 0
        %1197 = vmatpush2.bf16.xpose.msra.mxu0 0
        %1198 = vmatprep.subr.bf16.mxu0 0
        %1199 = vmatpush2.bf16.xpose.msra.mxu0 0
        %1200 = vmatprep.mubr.bf16.mxu0 0
        %1201 = vmatmul.mubr.bf16.gmra.mxu0 %v1163
        %v1202 = vpop.f32.mrf.mxu0
        %v1203 = vadd.f32 0.0, %v1202
        %v1204 = vpop.f32.mrf.mxu0
        %v1205 = vpop.f32.mrf.mxu0
        %v1206 = vadd.f32 0.0, %v1205
        %v1207 = vpop.f32.mrf.mxu0
        %1208 = vdwg.mxu0
        %v1210 = vsel %vm973, %v874, 0
        %v1213 = vsel %vm973, %v922, 0
        %1215 = vmatprep.subr.bf16.mxu0 0
        %1216 = vmatpush1.bf16.xpose.msra.mxu0 0
        %1217 = vmatprep.subr.bf16.mxu0 0
        %1218 = vmatpush1.bf16.xpose.msra.mxu0 0
        %1219 = vmatprep.subr.bf16.mxu0 0
        %1220 = vmatpush1.bf16.xpose.msra.mxu0 0
        %1221 = vmatprep.subr.bf16.mxu0 0
        %1222 = vmatpush1.bf16.xpose.msra.mxu0 0
        %1223 = vmatprep.subr.bf16.mxu0 0
        %1224 = vmatpush1.bf16.xpose.msra.mxu0 0
        %1225 = vmatprep.subr.bf16.mxu0 0
        %1226 = vmatpush1.bf16.xpose.msra.mxu0 0
        %1227 = vmatprep.subr.bf16.mxu0 0
        %1228 = vmatpush1.bf16.xpose.msra.mxu0 0
        %1229 = vmatprep.subr.bf16.mxu0 0
        %1230 = vmatpush1.bf16.xpose.msra.mxu0 %v1213
        %1231 = vmatprep.subr.bf16.mxu0 0
        %1232 = vmatpush2.bf16.xpose.msra.mxu0 0
        %1233 = vmatprep.subr.bf16.mxu0 0
        %1234 = vmatpush2.bf16.xpose.msra.mxu0 0
        %1235 = vmatprep.subr.bf16.mxu0 0
        %1236 = vmatpush2.bf16.xpose.msra.mxu0 0
        %1237 = vmatprep.subr.bf16.mxu0 0
        %1238 = vmatpush2.bf16.xpose.msra.mxu0 0
        %1239 = vmatprep.subr.bf16.mxu0 0
        %1240 = vmatpush2.bf16.xpose.msra.mxu0 0
        %1241 = vmatprep.subr.bf16.mxu0 0
        %1242 = vmatpush2.bf16.xpose.msra.mxu0 0
        %1243 = vmatprep.subr.bf16.mxu0 0
        %1244 = vmatpush2.bf16.xpose.msra.mxu0 0
        %1245 = vmatprep.subr.bf16.mxu0 0
        %1246 = vmatpush2.bf16.xpose.msra.mxu0 0
        %1247 = vmatprep.mubr.bf16.mxu0 0
        %1248 = vmatmul.mubr.bf16.gmra.mxu0 %v1210
        %v1249 = vpop.f32.mrf.mxu0
        %v1250 = vadd.f32 0.0, %v1249
        %v1251 = vpop.f32.mrf.mxu0
        %v1252 = vpop.f32.mrf.mxu0
        %v1253 = vadd.f32 0.0, %v1252
        %v1254 = vpop.f32.mrf.mxu0
        %1255 = vdwg.mxu0
        %v1257 = vsel %vm973, %v875, 0
        %v1260 = vsel %vm973, %v923, 0
        %1262 = vmatprep.subr.bf16.mxu0 0
        %1263 = vmatpush1.bf16.xpose.msra.mxu0 0
        %1264 = vmatprep.subr.bf16.mxu0 0
        %1265 = vmatpush1.bf16.xpose.msra.mxu0 0
        %1266 = vmatprep.subr.bf16.mxu0 0
        %1267 = vmatpush1.bf16.xpose.msra.mxu0 0
        %1268 = vmatprep.subr.bf16.mxu0 0
        %1269 = vmatpush1.bf16.xpose.msra.mxu0 0
        %1270 = vmatprep.subr.bf16.mxu0 0
        %1271 = vmatpush1.bf16.xpose.msra.mxu0 0
        %1272 = vmatprep.subr.bf16.mxu0 0
        %1273 = vmatpush1.bf16.xpose.msra.mxu0 0
        %1274 = vmatprep.subr.bf16.mxu0 0
        %1275 = vmatpush1.bf16.xpose.msra.mxu0 0
        %1276 = vmatprep.subr.bf16.mxu0 0
        %1277 = vmatpush1.bf16.xpose.msra.mxu0 %v1260
        %1278 = vmatprep.subr.bf16.mxu0 0
        %1279 = vmatpush2.bf16.xpose.msra.mxu0 0
        %1280 = vmatprep.subr.bf16.mxu0 0
        %1281 = vmatpush2.bf16.xpose.msra.mxu0 0
        %1282 = vmatprep.subr.bf16.mxu0 0
        %1283 = vmatpush2.bf16.xpose.msra.mxu0 0
        %1284 = vmatprep.subr.bf16.mxu0 0
        %1285 = vmatpush2.bf16.xpose.msra.mxu0 0
        %1286 = vmatprep.subr.bf16.mxu0 0
        %1287 = vmatpush2.bf16.xpose.msra.mxu0 0
        %1288 = vmatprep.subr.bf16.mxu0 0
        %1289 = vmatpush2.bf16.xpose.msra.mxu0 0
        %1290 = vmatprep.subr.bf16.mxu0 0
        %1291 = vmatpush2.bf16.xpose.msra.mxu0 0
        %1292 = vmatprep.subr.bf16.mxu0 0
        %1293 = vmatpush2.bf16.xpose.msra.mxu0 0
        %1294 = vmatprep.mubr.bf16.mxu0 0
        %1295 = vmatmul.mubr.bf16.gmra.mxu0 %v1257
        %v1296 = vpop.f32.mrf.mxu0
        %v1297 = vadd.f32 0.0, %v1296
        %v1298 = vpop.f32.mrf.mxu0
        %v1299 = vpop.f32.mrf.mxu0
        %v1300 = vadd.f32 0.0, %v1299
        %v1301 = vpop.f32.mrf.mxu0
        %1302 = vdwg.mxu0
        %v1304 = vsel %vm973, %v876, 0
        %v1307 = vsel %vm973, %v924, 0
        %1309 = vmatprep.subr.bf16.mxu0 0
        %1310 = vmatpush1.bf16.xpose.msra.mxu0 0
        %1311 = vmatprep.subr.bf16.mxu0 0
        %1312 = vmatpush1.bf16.xpose.msra.mxu0 0
        %1313 = vmatprep.subr.bf16.mxu0 0
        %1314 = vmatpush1.bf16.xpose.msra.mxu0 0
        %1315 = vmatprep.subr.bf16.mxu0 0
        %1316 = vmatpush1.bf16.xpose.msra.mxu0 0
        %1317 = vmatprep.subr.bf16.mxu0 0
        %1318 = vmatpush1.bf16.xpose.msra.mxu0 0
        %1319 = vmatprep.subr.bf16.mxu0 0
        %1320 = vmatpush1.bf16.xpose.msra.mxu0 0
        %1321 = vmatprep.subr.bf16.mxu0 0
        %1322 = vmatpush1.bf16.xpose.msra.mxu0 0
        %1323 = vmatprep.subr.bf16.mxu0 0
        %1324 = vmatpush1.bf16.xpose.msra.mxu0 %v1307
        %1325 = vmatprep.subr.bf16.mxu0 0
        %1326 = vmatpush2.bf16.xpose.msra.mxu0 0
        %1327 = vmatprep.subr.bf16.mxu0 0
        %1328 = vmatpush2.bf16.xpose.msra.mxu0 0
        %1329 = vmatprep.subr.bf16.mxu0 0
        %1330 = vmatpush2.bf16.xpose.msra.mxu0 0
        %1331 = vmatprep.subr.bf16.mxu0 0
        %1332 = vmatpush2.bf16.xpose.msra.mxu0 0
        %1333 = vmatprep.subr.bf16.mxu0 0
        %1334 = vmatpush2.bf16.xpose.msra.mxu0 0
        %1335 = vmatprep.subr.bf16.mxu0 0
        %1336 = vmatpush2.bf16.xpose.msra.mxu0 0
        %1337 = vmatprep.subr.bf16.mxu0 0
        %1338 = vmatpush2.bf16.xpose.msra.mxu0 0
        %1339 = vmatprep.subr.bf16.mxu0 0
        %1340 = vmatpush2.bf16.xpose.msra.mxu0 0
        %1341 = vmatprep.mubr.bf16.mxu0 0
        %1342 = vmatmul.mubr.bf16.gmra.mxu0 %v1304
        %v1343 = vpop.f32.mrf.mxu0
        %v1344 = vadd.f32 0.0, %v1343
        %v1345 = vpop.f32.mrf.mxu0
        %v1346 = vpop.f32.mrf.mxu0
        %v1347 = vadd.f32 0.0, %v1346
        %v1348 = vpop.f32.mrf.mxu0
        %1349 = vdwg.mxu0
        %vm1350 = vcmask 130048
        %v1351 = vsel %vm1350, %v1015, -inf
        %1352 = vmax.xlane.f32.xlu0 %v1351
        %v1353 = vpop.xlane.xlu0 %1352
        %v1354 = vsel %vm1350, %v1018, -inf
        %1355 = vmax.xlane.f32.xlu0 %v1354
        %v1356 = vpop.xlane.xlu0 %1355
        %v1357 = vsel %vm1350, %v1062, -inf
        %1358 = vmax.xlane.f32.xlu0 %v1357
        %v1359 = vpop.xlane.xlu0 %1358
        %v1360 = vsel %vm1350, %v1065, -inf
        %1361 = vmax.xlane.f32.xlu0 %v1360
        %v1362 = vpop.xlane.xlu0 %1361
        %v1363 = vsel %vm1350, %v1109, -inf
        %1364 = vmax.xlane.f32.xlu0 %v1363
        %v1365 = vpop.xlane.xlu0 %1364
        %v1366 = vsel %vm1350, %v1112, -inf
        %1367 = vmax.xlane.f32.xlu0 %v1366
        %v1368 = vpop.xlane.xlu0 %1367
        %v1369 = vsel %vm1350, %v1156, -inf
        %1370 = vmax.xlane.f32.xlu0 %v1369
        %v1371 = vpop.xlane.xlu0 %1370
        %v1372 = vsel %vm1350, %v1159, -inf
        %1373 = vmax.xlane.f32.xlu0 %v1372
        %v1374 = vpop.xlane.xlu0 %1373
        %v1375 = vsel %vm1350, %v1203, -inf
        %1376 = vmax.xlane.f32.xlu0 %v1375
        %v1377 = vpop.xlane.xlu0 %1376
        %v1378 = vsel %vm1350, %v1206, -inf
        %1379 = vmax.xlane.f32.xlu0 %v1378
        %v1380 = vpop.xlane.xlu0 %1379
        %v1381 = vsel %vm1350, %v1250, -inf
        %1382 = vmax.xlane.f32.xlu0 %v1381
        %v1383 = vpop.xlane.xlu0 %1382
        %v1384 = vsel %vm1350, %v1253, -inf
        %1385 = vmax.xlane.f32.xlu0 %v1384
        %v1386 = vpop.xlane.xlu0 %1385
        %v1387 = vsel %vm1350, %v1297, -inf
        %1388 = vmax.xlane.f32.xlu0 %v1387
        %v1389 = vpop.xlane.xlu0 %1388
        %v1390 = vsel %vm1350, %v1300, -inf
        %1391 = vmax.xlane.f32.xlu0 %v1390
        %v1392 = vpop.xlane.xlu0 %1391
        %v1393 = vsel %vm1350, %v1344, -inf
        %1394 = vmax.xlane.f32.xlu0 %v1393
        %v1395 = vpop.xlane.xlu0 %1394
        %v1396 = vsel %vm1350, %v1347, -inf
        %1397 = vmax.xlane.f32.xlu0 %v1396
        %v1398 = vpop.xlane.xlu0 %1397
        %v1399 = vsub.f32 %v1015, %v1353
        %v1400 = vsub.f32 %v1018, %v1356
        %v1401 = vsub.f32 %v1062, %v1359
        %v1402 = vsub.f32 %v1065, %v1362
        %v1403 = vsub.f32 %v1109, %v1365
        %v1404 = vsub.f32 %v1112, %v1368
        %v1405 = vsub.f32 %v1156, %v1371
        %v1406 = vsub.f32 %v1159, %v1374
        %v1407 = vsub.f32 %v1203, %v1377
        %v1408 = vsub.f32 %v1206, %v1380
        %v1409 = vsub.f32 %v1250, %v1383
        %v1410 = vsub.f32 %v1253, %v1386
        %v1411 = vsub.f32 %v1297, %v1389
        %v1412 = vsub.f32 %v1300, %v1392
        %v1413 = vsub.f32 %v1344, %v1395
        %v1414 = vsub.f32 %v1347, %v1398
        %v1415 = vmul.f32 %v1399, 1.442695
        %v1416 = vpow.pop %v1415
        %v1417 = vmul.f32 %v1400, 1.442695
        %v1418 = vpow.pop %v1417
        %v1419 = vmul.f32 %v1401, 1.442695
        %v1420 = vpow.pop %v1419
        %v1421 = vmul.f32 %v1402, 1.442695
        %v1422 = vpow.pop %v1421
        %v1423 = vmul.f32 %v1403, 1.442695
        %v1424 = vpow.pop %v1423
        %v1425 = vmul.f32 %v1404, 1.442695
        %v1426 = vpow.pop %v1425
        %v1427 = vmul.f32 %v1405, 1.442695
        %v1428 = vpow.pop %v1427
        %v1429 = vmul.f32 %v1406, 1.442695
        %v1430 = vpow.pop %v1429
        %v1431 = vmul.f32 %v1407, 1.442695
        %v1432 = vpow.pop %v1431
        %v1433 = vmul.f32 %v1408, 1.442695
        %v1434 = vpow.pop %v1433
        %v1435 = vmul.f32 %v1409, 1.442695
        %v1436 = vpow.pop %v1435
        %v1437 = vmul.f32 %v1410, 1.442695
        %v1438 = vpow.pop %v1437
        %v1439 = vmul.f32 %v1411, 1.442695
        %v1440 = vpow.pop %v1439
        %v1441 = vmul.f32 %v1412, 1.442695
        %v1442 = vpow.pop %v1441
        %v1443 = vmul.f32 %v1413, 1.442695
        %v1444 = vpow.pop %v1443
        %v1445 = vmul.f32 %v1414, 1.442695
        %v1446 = vpow.pop %v1445
        %v1447 = vsel %vm1350, %v1416, 0.0
        %1448 = vadd.xlane.f32.xlu0 %v1447
        %v1449 = vpop.xlane.xlu0 %1448
        %v1450 = vsel %vm1350, %v1418, 0.0
        %1451 = vadd.xlane.f32.xlu0 %v1450
        %v1452 = vpop.xlane.xlu0 %1451
        %v1453 = vsel %vm1350, %v1420, 0.0
        %1454 = vadd.xlane.f32.xlu0 %v1453
        %v1455 = vpop.xlane.xlu0 %1454
        %v1456 = vsel %vm1350, %v1422, 0.0
        %1457 = vadd.xlane.f32.xlu0 %v1456
        %v1458 = vpop.xlane.xlu0 %1457
        %v1459 = vsel %vm1350, %v1424, 0.0
        %1460 = vadd.xlane.f32.xlu0 %v1459
        %v1461 = vpop.xlane.xlu0 %1460
        %v1462 = vsel %vm1350, %v1426, 0.0
        %1463 = vadd.xlane.f32.xlu0 %v1462
        %v1464 = vpop.xlane.xlu0 %1463
        %v1465 = vsel %vm1350, %v1428, 0.0
        %1466 = vadd.xlane.f32.xlu0 %v1465
        %v1467 = vpop.xlane.xlu0 %1466
        %v1468 = vsel %vm1350, %v1430, 0.0
        %1469 = vadd.xlane.f32.xlu0 %v1468
        %v1470 = vpop.xlane.xlu0 %1469
        %v1471 = vsel %vm1350, %v1432, 0.0
        %1472 = vadd.xlane.f32.xlu0 %v1471
        %v1473 = vpop.xlane.xlu0 %1472
        %v1474 = vsel %vm1350, %v1434, 0.0
        %1475 = vadd.xlane.f32.xlu0 %v1474
        %v1476 = vpop.xlane.xlu0 %1475
        %v1477 = vsel %vm1350, %v1436, 0.0
        %1478 = vadd.xlane.f32.xlu0 %v1477
        %v1479 = vpop.xlane.xlu0 %1478
        %v1480 = vsel %vm1350, %v1438, 0.0
        %1481 = vadd.xlane.f32.xlu0 %v1480
        %v1482 = vpop.xlane.xlu0 %1481
        %v1483 = vsel %vm1350, %v1440, 0.0
        %1484 = vadd.xlane.f32.xlu0 %v1483
        %v1485 = vpop.xlane.xlu0 %1484
        %v1486 = vsel %vm1350, %v1442, 0.0
        %1487 = vadd.xlane.f32.xlu0 %v1486
        %v1488 = vpop.xlane.xlu0 %1487
        %v1489 = vsel %vm1350, %v1444, 0.0
        %1490 = vadd.xlane.f32.xlu0 %v1489
        %v1491 = vpop.xlane.xlu0 %1490
        %v1492 = vsel %vm1350, %v1446, 0.0
        %1493 = vadd.xlane.f32.xlu0 %v1492
        %v1494 = vpop.xlane.xlu0 %1493
        %v1495 = vrcp.pop %v1449
        %v1496 = vrcp.pop %v1452
        %v1497 = vrcp.pop %v1455
        %v1498 = vrcp.pop %v1458
        %v1499 = vrcp.pop %v1461
        %v1500 = vrcp.pop %v1464
        %v1501 = vrcp.pop %v1467
        %v1502 = vrcp.pop %v1470
        %v1503 = vrcp.pop %v1473
        %v1504 = vrcp.pop %v1476
        %v1505 = vrcp.pop %v1479
        %v1506 = vrcp.pop %v1482
        %v1507 = vrcp.pop %v1485
        %v1508 = vrcp.pop %v1488
        %v1509 = vrcp.pop %v1491
        %v1510 = vrcp.pop %v1494
        %v1511 = vmul.f32 %v1416, %v1495
        %v1512 = vmul.f32 %v1418, %v1496
        %v1513 = vmul.f32 %v1420, %v1497
        %v1514 = vmul.f32 %v1422, %v1498
        %v1515 = vmul.f32 %v1424, %v1499
        %v1516 = vmul.f32 %v1426, %v1500
        %v1517 = vmul.f32 %v1428, %v1501
        %v1518 = vmul.f32 %v1430, %v1502
        %v1519 = vmul.f32 %v1432, %v1503
        %v1520 = vmul.f32 %v1434, %v1504
        %v1521 = vmul.f32 %v1436, %v1505
        %v1522 = vmul.f32 %v1438, %v1506
        %v1523 = vmul.f32 %v1440, %v1507
        %v1524 = vmul.f32 %v1442, %v1508
        %v1525 = vmul.f32 %v1444, %v1509
        %v1526 = vmul.f32 %v1446, %v1510
        %v1527 = vpack.c.bf16 %v1512, %v1511
        %v1528 = vpack.c.bf16 %v1514, %v1513
        %v1529 = vpack.c.bf16 %v1516, %v1515
        %v1530 = vpack.c.bf16 %v1518, %v1517
        %v1531 = vpack.c.bf16 %v1520, %v1519
        %v1532 = vpack.c.bf16 %v1522, %v1521
        %v1533 = vpack.c.bf16 %v1524, %v1523
        %v1534 = vpack.c.bf16 %v1526, %v1525
        %v1536 = vsel %vm1350, %v1527, 0
        %1538 = vmatprep.subr.bf16.mxu0 0
        %1539 = vmatpush1.bf16.msra.mxu0 0
        %1540 = vmatprep.subr.bf16.mxu0 0
        %1541 = vmatpush1.bf16.msra.mxu0 0
        %1542 = vmatprep.subr.bf16.mxu0 0
        %1543 = vmatpush1.bf16.msra.mxu0 0
        %1544 = vmatprep.subr.bf16.mxu0 0
        %1545 = vmatpush1.bf16.msra.mxu0 0
        %1546 = vmatprep.subr.bf16.mxu0 0
        %1547 = vmatpush1.bf16.msra.mxu0 0
        %1548 = vmatprep.subr.bf16.mxu0 0
        %1549 = vmatpush1.bf16.msra.mxu0 0
        %1550 = vmatprep.subr.bf16.mxu0 0
        %1551 = vmatpush1.bf16.msra.mxu0 0
        %1552 = vmatprep.subr.bf16.mxu0 0
        %1553 = vmatpush1.bf16.msra.mxu0 %v965
        %1554 = vmatprep.subr.bf16.mxu0 0
        %1555 = vmatpush2.bf16.msra.mxu0 0
        %1556 = vmatprep.subr.bf16.mxu0 0
        %1557 = vmatpush2.bf16.msra.mxu0 0
        %1558 = vmatprep.subr.bf16.mxu0 0
        %1559 = vmatpush2.bf16.msra.mxu0 0
        %1560 = vmatprep.subr.bf16.mxu0 0
        %1561 = vmatpush2.bf16.msra.mxu0 0
        %1562 = vmatprep.subr.bf16.mxu0 0
        %1563 = vmatpush2.bf16.msra.mxu0 0
        %1564 = vmatprep.subr.bf16.mxu0 0
        %1565 = vmatpush2.bf16.msra.mxu0 0
        %1566 = vmatprep.subr.bf16.mxu0 0
        %1567 = vmatpush2.bf16.msra.mxu0 0
        %1568 = vmatprep.subr.bf16.mxu0 0
        %1569 = vmatpush2.bf16.msra.mxu0 0
        %1570 = vmatprep.mubr.bf16.mxu0 0
        %1571 = vmatmul.mubr.bf16.gmra.mxu0 %v1536
        %v1572 = vpop.f32.mrf.mxu0
        %v1573 = vadd.f32 0.0, %v1572
        %v1574 = vpop.f32.mrf.mxu0
        %v1575 = vpop.f32.mrf.mxu0
        %v1576 = vadd.f32 0.0, %v1575
        %v1577 = vpop.f32.mrf.mxu0
        %1578 = vdwg.mxu0
        %v1580 = vsel %vm1350, %v1528, 0
        %1582 = vmatprep.subr.bf16.mxu0 0
        %1583 = vmatpush1.bf16.msra.mxu0 0
        %1584 = vmatprep.subr.bf16.mxu0 0
        %1585 = vmatpush1.bf16.msra.mxu0 0
        %1586 = vmatprep.subr.bf16.mxu0 0
        %1587 = vmatpush1.bf16.msra.mxu0 0
        %1588 = vmatprep.subr.bf16.mxu0 0
        %1589 = vmatpush1.bf16.msra.mxu0 0
        %1590 = vmatprep.subr.bf16.mxu0 0
        %1591 = vmatpush1.bf16.msra.mxu0 0
        %1592 = vmatprep.subr.bf16.mxu0 0
        %1593 = vmatpush1.bf16.msra.mxu0 0
        %1594 = vmatprep.subr.bf16.mxu0 0
        %1595 = vmatpush1.bf16.msra.mxu0 0
        %1596 = vmatprep.subr.bf16.mxu0 0
        %1597 = vmatpush1.bf16.msra.mxu0 %v966
        %1598 = vmatprep.subr.bf16.mxu0 0
        %1599 = vmatpush2.bf16.msra.mxu0 0
        %1600 = vmatprep.subr.bf16.mxu0 0
        %1601 = vmatpush2.bf16.msra.mxu0 0
        %1602 = vmatprep.subr.bf16.mxu0 0
        %1603 = vmatpush2.bf16.msra.mxu0 0
        %1604 = vmatprep.subr.bf16.mxu0 0
        %1605 = vmatpush2.bf16.msra.mxu0 0
        %1606 = vmatprep.subr.bf16.mxu0 0
        %1607 = vmatpush2.bf16.msra.mxu0 0
        %1608 = vmatprep.subr.bf16.mxu0 0
        %1609 = vmatpush2.bf16.msra.mxu0 0
        %1610 = vmatprep.subr.bf16.mxu0 0
        %1611 = vmatpush2.bf16.msra.mxu0 0
        %1612 = vmatprep.subr.bf16.mxu0 0
        %1613 = vmatpush2.bf16.msra.mxu0 0
        %1614 = vmatprep.mubr.bf16.mxu0 0
        %1615 = vmatmul.mubr.bf16.gmra.mxu0 %v1580
        %v1616 = vpop.f32.mrf.mxu0
        %v1617 = vadd.f32 0.0, %v1616
        %v1618 = vpop.f32.mrf.mxu0
        %v1619 = vpop.f32.mrf.mxu0
        %v1620 = vadd.f32 0.0, %v1619
        %v1621 = vpop.f32.mrf.mxu0
        %1622 = vdwg.mxu0
        %v1624 = vsel %vm1350, %v1529, 0
        %1626 = vmatprep.subr.bf16.mxu0 0
        %1627 = vmatpush1.bf16.msra.mxu0 0
        %1628 = vmatprep.subr.bf16.mxu0 0
        %1629 = vmatpush1.bf16.msra.mxu0 0
        %1630 = vmatprep.subr.bf16.mxu0 0
        %1631 = vmatpush1.bf16.msra.mxu0 0
        %1632 = vmatprep.subr.bf16.mxu0 0
        %1633 = vmatpush1.bf16.msra.mxu0 0
        %1634 = vmatprep.subr.bf16.mxu0 0
        %1635 = vmatpush1.bf16.msra.mxu0 0
        %1636 = vmatprep.subr.bf16.mxu0 0
        %1637 = vmatpush1.bf16.msra.mxu0 0
        %1638 = vmatprep.subr.bf16.mxu0 0
        %1639 = vmatpush1.bf16.msra.mxu0 0
        %1640 = vmatprep.subr.bf16.mxu0 0
        %1641 = vmatpush1.bf16.msra.mxu0 %v967
        %1642 = vmatprep.subr.bf16.mxu0 0
        %1643 = vmatpush2.bf16.msra.mxu0 0
        %1644 = vmatprep.subr.bf16.mxu0 0
        %1645 = vmatpush2.bf16.msra.mxu0 0
        %1646 = vmatprep.subr.bf16.mxu0 0
        %1647 = vmatpush2.bf16.msra.mxu0 0
        %1648 = vmatprep.subr.bf16.mxu0 0
        %1649 = vmatpush2.bf16.msra.mxu0 0
        %1650 = vmatprep.subr.bf16.mxu0 0
        %1651 = vmatpush2.bf16.msra.mxu0 0
        %1652 = vmatprep.subr.bf16.mxu0 0
        %1653 = vmatpush2.bf16.msra.mxu0 0
        %1654 = vmatprep.subr.bf16.mxu0 0
        %1655 = vmatpush2.bf16.msra.mxu0 0
        %1656 = vmatprep.subr.bf16.mxu0 0
        %1657 = vmatpush2.bf16.msra.mxu0 0
        %1658 = vmatprep.mubr.bf16.mxu0 0
        %1659 = vmatmul.mubr.bf16.gmra.mxu0 %v1624
        %v1660 = vpop.f32.mrf.mxu0
        %v1661 = vadd.f32 0.0, %v1660
        %v1662 = vpop.f32.mrf.mxu0
        %v1663 = vpop.f32.mrf.mxu0
        %v1664 = vadd.f32 0.0, %v1663
        %v1665 = vpop.f32.mrf.mxu0
        %1666 = vdwg.mxu0
        %v1668 = vsel %vm1350, %v1530, 0
        %1670 = vmatprep.subr.bf16.mxu0 0
        %1671 = vmatpush1.bf16.msra.mxu0 0
        %1672 = vmatprep.subr.bf16.mxu0 0
        %1673 = vmatpush1.bf16.msra.mxu0 0
        %1674 = vmatprep.subr.bf16.mxu0 0
        %1675 = vmatpush1.bf16.msra.mxu0 0
        %1676 = vmatprep.subr.bf16.mxu0 0
        %1677 = vmatpush1.bf16.msra.mxu0 0
        %1678 = vmatprep.subr.bf16.mxu0 0
        %1679 = vmatpush1.bf16.msra.mxu0 0
        %1680 = vmatprep.subr.bf16.mxu0 0
        %1681 = vmatpush1.bf16.msra.mxu0 0
        %1682 = vmatprep.subr.bf16.mxu0 0
        %1683 = vmatpush1.bf16.msra.mxu0 0
        %1684 = vmatprep.subr.bf16.mxu0 0
        %1685 = vmatpush1.bf16.msra.mxu0 %v968
        %1686 = vmatprep.subr.bf16.mxu0 0
        %1687 = vmatpush2.bf16.msra.mxu0 0
        %1688 = vmatprep.subr.bf16.mxu0 0
        %1689 = vmatpush2.bf16.msra.mxu0 0
        %1690 = vmatprep.subr.bf16.mxu0 0
        %1691 = vmatpush2.bf16.msra.mxu0 0
        %1692 = vmatprep.subr.bf16.mxu0 0
        %1693 = vmatpush2.bf16.msra.mxu0 0
        %1694 = vmatprep.subr.bf16.mxu0 0
        %1695 = vmatpush2.bf16.msra.mxu0 0
        %1696 = vmatprep.subr.bf16.mxu0 0
        %1697 = vmatpush2.bf16.msra.mxu0 0
        %1698 = vmatprep.subr.bf16.mxu0 0
        %1699 = vmatpush2.bf16.msra.mxu0 0
        %1700 = vmatprep.subr.bf16.mxu0 0
        %1701 = vmatpush2.bf16.msra.mxu0 0
        %1702 = vmatprep.mubr.bf16.mxu0 0
        %1703 = vmatmul.mubr.bf16.gmra.mxu0 %v1668
        %v1704 = vpop.f32.mrf.mxu0
        %v1705 = vadd.f32 0.0, %v1704
        %v1706 = vpop.f32.mrf.mxu0
        %v1707 = vpop.f32.mrf.mxu0
        %v1708 = vadd.f32 0.0, %v1707
        %v1709 = vpop.f32.mrf.mxu0
        %1710 = vdwg.mxu0
        %v1712 = vsel %vm1350, %v1531, 0
        %1714 = vmatprep.subr.bf16.mxu0 0
        %1715 = vmatpush1.bf16.msra.mxu0 0
        %1716 = vmatprep.subr.bf16.mxu0 0
        %1717 = vmatpush1.bf16.msra.mxu0 0
        %1718 = vmatprep.subr.bf16.mxu0 0
        %1719 = vmatpush1.bf16.msra.mxu0 0
        %1720 = vmatprep.subr.bf16.mxu0 0
        %1721 = vmatpush1.bf16.msra.mxu0 0
        %1722 = vmatprep.subr.bf16.mxu0 0
        %1723 = vmatpush1.bf16.msra.mxu0 0
        %1724 = vmatprep.subr.bf16.mxu0 0
        %1725 = vmatpush1.bf16.msra.mxu0 0
        %1726 = vmatprep.subr.bf16.mxu0 0
        %1727 = vmatpush1.bf16.msra.mxu0 0
        %1728 = vmatprep.subr.bf16.mxu0 0
        %1729 = vmatpush1.bf16.msra.mxu0 %v969
        %1730 = vmatprep.subr.bf16.mxu0 0
        %1731 = vmatpush2.bf16.msra.mxu0 0
        %1732 = vmatprep.subr.bf16.mxu0 0
        %1733 = vmatpush2.bf16.msra.mxu0 0
        %1734 = vmatprep.subr.bf16.mxu0 0
        %1735 = vmatpush2.bf16.msra.mxu0 0
        %1736 = vmatprep.subr.bf16.mxu0 0
        %1737 = vmatpush2.bf16.msra.mxu0 0
        %1738 = vmatprep.subr.bf16.mxu0 0
        %1739 = vmatpush2.bf16.msra.mxu0 0
        %1740 = vmatprep.subr.bf16.mxu0 0
        %1741 = vmatpush2.bf16.msra.mxu0 0
        %1742 = vmatprep.subr.bf16.mxu0 0
        %1743 = vmatpush2.bf16.msra.mxu0 0
        %1744 = vmatprep.subr.bf16.mxu0 0
        %1745 = vmatpush2.bf16.msra.mxu0 0
        %1746 = vmatprep.mubr.bf16.mxu0 0
        %1747 = vmatmul.mubr.bf16.gmra.mxu0 %v1712
        %v1748 = vpop.f32.mrf.mxu0
        %v1749 = vadd.f32 0.0, %v1748
        %v1750 = vpop.f32.mrf.mxu0
        %v1751 = vpop.f32.mrf.mxu0
        %v1752 = vadd.f32 0.0, %v1751
        %v1753 = vpop.f32.mrf.mxu0
        %1754 = vdwg.mxu0
        %v1756 = vsel %vm1350, %v1532, 0
        %1758 = vmatprep.subr.bf16.mxu0 0
        %1759 = vmatpush1.bf16.msra.mxu0 0
        %1760 = vmatprep.subr.bf16.mxu0 0
        %1761 = vmatpush1.bf16.msra.mxu0 0
        %1762 = vmatprep.subr.bf16.mxu0 0
        %1763 = vmatpush1.bf16.msra.mxu0 0
        %1764 = vmatprep.subr.bf16.mxu0 0
        %1765 = vmatpush1.bf16.msra.mxu0 0
        %1766 = vmatprep.subr.bf16.mxu0 0
        %1767 = vmatpush1.bf16.msra.mxu0 0
        %1768 = vmatprep.subr.bf16.mxu0 0
        %1769 = vmatpush1.bf16.msra.mxu0 0
        %1770 = vmatprep.subr.bf16.mxu0 0
        %1771 = vmatpush1.bf16.msra.mxu0 0
        %1772 = vmatprep.subr.bf16.mxu0 0
        %1773 = vmatpush1.bf16.msra.mxu0 %v970
        %1774 = vmatprep.subr.bf16.mxu0 0
        %1775 = vmatpush2.bf16.msra.mxu0 0
        %1776 = vmatprep.subr.bf16.mxu0 0
        %1777 = vmatpush2.bf16.msra.mxu0 0
        %1778 = vmatprep.subr.bf16.mxu0 0
        %1779 = vmatpush2.bf16.msra.mxu0 0
        %1780 = vmatprep.subr.bf16.mxu0 0
        %1781 = vmatpush2.bf16.msra.mxu0 0
        %1782 = vmatprep.subr.bf16.mxu0 0
        %1783 = vmatpush2.bf16.msra.mxu0 0
        %1784 = vmatprep.subr.bf16.mxu0 0
        %1785 = vmatpush2.bf16.msra.mxu0 0
        %1786 = vmatprep.subr.bf16.mxu0 0
        %1787 = vmatpush2.bf16.msra.mxu0 0
        %1788 = vmatprep.subr.bf16.mxu0 0
        %1789 = vmatpush2.bf16.msra.mxu0 0
        %1790 = vmatprep.mubr.bf16.mxu0 0
        %1791 = vmatmul.mubr.bf16.gmra.mxu0 %v1756
        %v1792 = vpop.f32.mrf.mxu0
        %v1793 = vadd.f32 0.0, %v1792
        %v1794 = vpop.f32.mrf.mxu0
        %v1795 = vpop.f32.mrf.mxu0
        %v1796 = vadd.f32 0.0, %v1795
        %v1797 = vpop.f32.mrf.mxu0
        %1798 = vdwg.mxu0
        %v1800 = vsel %vm1350, %v1533, 0
        %1802 = vmatprep.subr.bf16.mxu0 0
        %1803 = vmatpush1.bf16.msra.mxu0 0
        %1804 = vmatprep.subr.bf16.mxu0 0
        %1805 = vmatpush1.bf16.msra.mxu0 0
        %1806 = vmatprep.subr.bf16.mxu0 0
        %1807 = vmatpush1.bf16.msra.mxu0 0
        %1808 = vmatprep.subr.bf16.mxu0 0
        %1809 = vmatpush1.bf16.msra.mxu0 0
        %1810 = vmatprep.subr.bf16.mxu0 0
        %1811 = vmatpush1.bf16.msra.mxu0 0
        %1812 = vmatprep.subr.bf16.mxu0 0
        %1813 = vmatpush1.bf16.msra.mxu0 0
        %1814 = vmatprep.subr.bf16.mxu0 0
        %1815 = vmatpush1.bf16.msra.mxu0 0
        %1816 = vmatprep.subr.bf16.mxu0 0
        %1817 = vmatpush1.bf16.msra.mxu0 %v971
        %1818 = vmatprep.subr.bf16.mxu0 0
        %1819 = vmatpush2.bf16.msra.mxu0 0
        %1820 = vmatprep.subr.bf16.mxu0 0
        %1821 = vmatpush2.bf16.msra.mxu0 0
        %1822 = vmatprep.subr.bf16.mxu0 0
        %1823 = vmatpush2.bf16.msra.mxu0 0
        %1824 = vmatprep.subr.bf16.mxu0 0
        %1825 = vmatpush2.bf16.msra.mxu0 0
        %1826 = vmatprep.subr.bf16.mxu0 0
        %1827 = vmatpush2.bf16.msra.mxu0 0
        %1828 = vmatprep.subr.bf16.mxu0 0
        %1829 = vmatpush2.bf16.msra.mxu0 0
        %1830 = vmatprep.subr.bf16.mxu0 0
        %1831 = vmatpush2.bf16.msra.mxu0 0
        %1832 = vmatprep.subr.bf16.mxu0 0
        %1833 = vmatpush2.bf16.msra.mxu0 0
        %1834 = vmatprep.mubr.bf16.mxu0 0
        %1835 = vmatmul.mubr.bf16.gmra.mxu0 %v1800
        %v1836 = vpop.f32.mrf.mxu0
        %v1837 = vadd.f32 0.0, %v1836
        %v1838 = vpop.f32.mrf.mxu0
        %v1839 = vpop.f32.mrf.mxu0
        %v1840 = vadd.f32 0.0, %v1839
        %v1841 = vpop.f32.mrf.mxu0
        %1842 = vdwg.mxu0
        %v1844 = vsel %vm1350, %v1534, 0
        %1846 = vmatprep.subr.bf16.mxu0 0
        %1847 = vmatpush1.bf16.msra.mxu0 0
        %1848 = vmatprep.subr.bf16.mxu0 0
        %1849 = vmatpush1.bf16.msra.mxu0 0
        %1850 = vmatprep.subr.bf16.mxu0 0
        %1851 = vmatpush1.bf16.msra.mxu0 0
        %1852 = vmatprep.subr.bf16.mxu0 0
        %1853 = vmatpush1.bf16.msra.mxu0 0
        %1854 = vmatprep.subr.bf16.mxu0 0
        %1855 = vmatpush1.bf16.msra.mxu0 0
        %1856 = vmatprep.subr.bf16.mxu0 0
        %1857 = vmatpush1.bf16.msra.mxu0 0
        %1858 = vmatprep.subr.bf16.mxu0 0
        %1859 = vmatpush1.bf16.msra.mxu0 0
        %1860 = vmatprep.subr.bf16.mxu0 0
        %1861 = vmatpush1.bf16.msra.mxu0 %v972
        %1862 = vmatprep.subr.bf16.mxu0 0
        %1863 = vmatpush2.bf16.msra.mxu0 0
        %1864 = vmatprep.subr.bf16.mxu0 0
        %1865 = vmatpush2.bf16.msra.mxu0 0
        %1866 = vmatprep.subr.bf16.mxu0 0
        %1867 = vmatpush2.bf16.msra.mxu0 0
        %1868 = vmatprep.subr.bf16.mxu0 0
        %1869 = vmatpush2.bf16.msra.mxu0 0
        %1870 = vmatprep.subr.bf16.mxu0 0
        %1871 = vmatpush2.bf16.msra.mxu0 0
        %1872 = vmatprep.subr.bf16.mxu0 0
        %1873 = vmatpush2.bf16.msra.mxu0 0
        %1874 = vmatprep.subr.bf16.mxu0 0
        %1875 = vmatpush2.bf16.msra.mxu0 0
        %1876 = vmatprep.subr.bf16.mxu0 0
        %1877 = vmatpush2.bf16.msra.mxu0 0
        %1878 = vmatprep.mubr.bf16.mxu0 0
        %1879 = vmatmul.mubr.bf16.gmra.mxu0 %v1844
        %v1880 = vpop.f32.mrf.mxu0
        %v1881 = vadd.f32 0.0, %v1880
        %v1882 = vpop.f32.mrf.mxu0
        %v1883 = vpop.f32.mrf.mxu0
        %v1884 = vadd.f32 0.0, %v1883
        %v1885 = vpop.f32.mrf.mxu0
        %1886 = vdwg.mxu0
        %v1887 = vpack.c.bf16 %v1576, %v1573
        %v1888 = vpack.c.bf16 %v1620, %v1617
        %v1889 = vpack.c.bf16 %v1664, %v1661
        %v1890 = vpack.c.bf16 %v1708, %v1705
        %v1891 = vpack.c.bf16 %v1752, %v1749
        %v1892 = vpack.c.bf16 %v1796, %v1793
        %v1893 = vpack.c.bf16 %v1840, %v1837
        %v1894 = vpack.c.bf16 %v1884, %v1881
        %v1895 = vld [vmem:[#allocation5] sm:$0xf]
        %v1896 = vld [vmem:[#allocation5 + $0x4] sm:$0xf]
        %v1897 = vld [vmem:[#allocation5 + $0x8] sm:$0xf]
        %v1898 = vld [vmem:[#allocation5 + $0xc] sm:$0xf]
        %v1900 = vsel %vm973, %v1887, 0
        %v1903 = vsel %vm973, %v1888, 0
        %vm1905 = vcmask 1043456
        %v1907 = vsel %vm1905, %v1895, 0
        %1909 = vmatprep.subr.bf16.mxu0 0
        %1910 = vmatpush1.bf16.msra.mxu0 0
        %1911 = vmatprep.subr.bf16.mxu0 0
        %1912 = vmatpush1.bf16.msra.mxu0 0
        %1913 = vmatprep.subr.bf16.mxu0 0
        %1914 = vmatpush1.bf16.msra.mxu0 0
        %1915 = vmatprep.subr.bf16.mxu0 0
        %1916 = vmatpush1.bf16.msra.mxu0 0
        %1917 = vmatprep.subr.bf16.mxu0 0
        %1918 = vmatpush1.bf16.msra.mxu0 0
        %1919 = vmatprep.subr.bf16.mxu0 0
        %1920 = vmatpush1.bf16.msra.mxu0 0
        %1921 = vmatprep.subr.bf16.mxu0 0
        %1922 = vmatpush1.bf16.msra.mxu0 0
        %1923 = vmatprep.subr.bf16.mxu0 0
        %1924 = vmatpush1.bf16.msra.mxu0 %v1907
        %1925 = vmatprep.subr.bf16.mxu0 0
        %1926 = vmatpush2.bf16.msra.mxu0 0
        %1927 = vmatprep.subr.bf16.mxu0 0
        %1928 = vmatpush2.bf16.msra.mxu0 0
        %1929 = vmatprep.subr.bf16.mxu0 0
        %1930 = vmatpush2.bf16.msra.mxu0 0
        %1931 = vmatprep.subr.bf16.mxu0 0
        %1932 = vmatpush2.bf16.msra.mxu0 0
        %1933 = vmatprep.subr.bf16.mxu0 0
        %1934 = vmatpush2.bf16.msra.mxu0 0
        %1935 = vmatprep.subr.bf16.mxu0 0
        %1936 = vmatpush2.bf16.msra.mxu0 0
        %1937 = vmatprep.subr.bf16.mxu0 0
        %1938 = vmatpush2.bf16.msra.mxu0 0
        %1939 = vmatprep.subr.bf16.mxu0 0
        %1940 = vmatpush2.bf16.msra.mxu0 0
        %1941 = vmatprep.mubr.bf16.mxu0 0
        %1942 = vmatmul.mubr.bf16.gmra.mxu0 %v1900
        %v1943 = vpop.f32.mrf.mxu0
        %v1944 = vadd.f32 0.0, %v1943
        %v1945 = vpop.f32.mrf.mxu0
        %v1946 = vpop.f32.mrf.mxu0
        %v1947 = vadd.f32 0.0, %v1946
        %v1948 = vpop.f32.mrf.mxu0
        %1949 = vmatprep.mubr.bf16.mxu0 0
        %1950 = vmatmul.mubr.bf16.gmra.mxu0 %v1903
        %v1951 = vpop.f32.mrf.mxu0
        %v1952 = vadd.f32 0.0, %v1951
        %v1953 = vpop.f32.mrf.mxu0
        %v1954 = vpop.f32.mrf.mxu0
        %v1955 = vadd.f32 0.0, %v1954
        %v1956 = vpop.f32.mrf.mxu0
        %1957 = vdwg.mxu0
        %v1959 = vsel %vm973, %v1889, 0
        %v1962 = vsel %vm973, %v1890, 0
        %v1965 = vsel %vm1905, %v1896, 0
        %1967 = vmatprep.subr.bf16.mxu0 0
        %1968 = vmatpush1.bf16.msra.mxu0 0
        %1969 = vmatprep.subr.bf16.mxu0 0
        %1970 = vmatpush1.bf16.msra.mxu0 0
        %1971 = vmatprep.subr.bf16.mxu0 0
        %1972 = vmatpush1.bf16.msra.mxu0 0
        %1973 = vmatprep.subr.bf16.mxu0 0
        %1974 = vmatpush1.bf16.msra.mxu0 0
        %1975 = vmatprep.subr.bf16.mxu0 0
        %1976 = vmatpush1.bf16.msra.mxu0 0
        %1977 = vmatprep.subr.bf16.mxu0 0
        %1978 = vmatpush1.bf16.msra.mxu0 0
        %1979 = vmatprep.subr.bf16.mxu0 0
        %1980 = vmatpush1.bf16.msra.mxu0 0
        %1981 = vmatprep.subr.bf16.mxu0 0
        %1982 = vmatpush1.bf16.msra.mxu0 %v1965
        %1983 = vmatprep.subr.bf16.mxu0 0
        %1984 = vmatpush2.bf16.msra.mxu0 0
        %1985 = vmatprep.subr.bf16.mxu0 0
        %1986 = vmatpush2.bf16.msra.mxu0 0
        %1987 = vmatprep.subr.bf16.mxu0 0
        %1988 = vmatpush2.bf16.msra.mxu0 0
        %1989 = vmatprep.subr.bf16.mxu0 0
        %1990 = vmatpush2.bf16.msra.mxu0 0
        %1991 = vmatprep.subr.bf16.mxu0 0
        %1992 = vmatpush2.bf16.msra.mxu0 0
        %1993 = vmatprep.subr.bf16.mxu0 0
        %1994 = vmatpush2.bf16.msra.mxu0 0
        %1995 = vmatprep.subr.bf16.mxu0 0
        %1996 = vmatpush2.bf16.msra.mxu0 0
        %1997 = vmatprep.subr.bf16.mxu0 0
        %1998 = vmatpush2.bf16.msra.mxu0 0
        %1999 = vmatprep.mubr.bf16.mxu0 0
        %2000 = vmatmul.mubr.bf16.gmra.mxu0 %v1959
        %v2001 = vpop.f32.mrf.mxu0
        %v2002 = vadd.f32 0.0, %v2001
        %v2003 = vpop.f32.mrf.mxu0
        %v2004 = vpop.f32.mrf.mxu0
        %v2005 = vadd.f32 0.0, %v2004
        %v2006 = vpop.f32.mrf.mxu0
        %2007 = vmatprep.mubr.bf16.mxu0 0
        %2008 = vmatmul.mubr.bf16.gmra.mxu0 %v1962
        %v2009 = vpop.f32.mrf.mxu0
        %v2010 = vadd.f32 0.0, %v2009
        %v2011 = vpop.f32.mrf.mxu0
        %v2012 = vpop.f32.mrf.mxu0
        %v2013 = vadd.f32 0.0, %v2012
        %v2014 = vpop.f32.mrf.mxu0
        %2015 = vdwg.mxu0
        %v2017 = vsel %vm973, %v1891, 0
        %v2020 = vsel %vm973, %v1892, 0
        %v2023 = vsel %vm1905, %v1897, 0
        %2025 = vmatprep.subr.bf16.mxu0 0
        %2026 = vmatpush1.bf16.msra.mxu0 0
        %2027 = vmatprep.subr.bf16.mxu0 0
        %2028 = vmatpush1.bf16.msra.mxu0 0
        %2029 = vmatprep.subr.bf16.mxu0 0
        %2030 = vmatpush1.bf16.msra.mxu0 0
        %2031 = vmatprep.subr.bf16.mxu0 0
        %2032 = vmatpush1.bf16.msra.mxu0 0
        %2033 = vmatprep.subr.bf16.mxu0 0
        %2034 = vmatpush1.bf16.msra.mxu0 0
        %2035 = vmatprep.subr.bf16.mxu0 0
        %2036 = vmatpush1.bf16.msra.mxu0 0
        %2037 = vmatprep.subr.bf16.mxu0 0
        %2038 = vmatpush1.bf16.msra.mxu0 0
        %2039 = vmatprep.subr.bf16.mxu0 0
        %2040 = vmatpush1.bf16.msra.mxu0 %v2023
        %2041 = vmatprep.subr.bf16.mxu0 0
        %2042 = vmatpush2.bf16.msra.mxu0 0
        %2043 = vmatprep.subr.bf16.mxu0 0
        %2044 = vmatpush2.bf16.msra.mxu0 0
        %2045 = vmatprep.subr.bf16.mxu0 0
        %2046 = vmatpush2.bf16.msra.mxu0 0
        %2047 = vmatprep.subr.bf16.mxu0 0
        %2048 = vmatpush2.bf16.msra.mxu0 0
        %2049 = vmatprep.subr.bf16.mxu0 0
        %2050 = vmatpush2.bf16.msra.mxu0 0
        %2051 = vmatprep.subr.bf16.mxu0 0
        %2052 = vmatpush2.bf16.msra.mxu0 0
        %2053 = vmatprep.subr.bf16.mxu0 0
        %2054 = vmatpush2.bf16.msra.mxu0 0
        %2055 = vmatprep.subr.bf16.mxu0 0
        %2056 = vmatpush2.bf16.msra.mxu0 0
        %2057 = vmatprep.mubr.bf16.mxu0 0
        %2058 = vmatmul.mubr.bf16.gmra.mxu0 %v2017
        %v2059 = vpop.f32.mrf.mxu0
        %v2060 = vadd.f32 0.0, %v2059
        %v2061 = vpop.f32.mrf.mxu0
        %v2062 = vpop.f32.mrf.mxu0
        %v2063 = vadd.f32 0.0, %v2062
        %v2064 = vpop.f32.mrf.mxu0
        %2065 = vmatprep.mubr.bf16.mxu0 0
        %2066 = vmatmul.mubr.bf16.gmra.mxu0 %v2020
        %v2067 = vpop.f32.mrf.mxu0
        %v2068 = vadd.f32 0.0, %v2067
        %v2069 = vpop.f32.mrf.mxu0
        %v2070 = vpop.f32.mrf.mxu0
        %v2071 = vadd.f32 0.0, %v2070
        %v2072 = vpop.f32.mrf.mxu0
        %2073 = vdwg.mxu0
        %v2075 = vsel %vm973, %v1893, 0
        %v2078 = vsel %vm973, %v1894, 0
        %v2081 = vsel %vm1905, %v1898, 0
        %2083 = vmatprep.subr.bf16.mxu0 0
        %2084 = vmatpush1.bf16.msra.mxu0 0
        %2085 = vmatprep.subr.bf16.mxu0 0
        %2086 = vmatpush1.bf16.msra.mxu0 0
        %2087 = vmatprep.subr.bf16.mxu0 0
        %2088 = vmatpush1.bf16.msra.mxu0 0
        %2089 = vmatprep.subr.bf16.mxu0 0
        %2090 = vmatpush1.bf16.msra.mxu0 0
        %2091 = vmatprep.subr.bf16.mxu0 0
        %2092 = vmatpush1.bf16.msra.mxu0 0
        %2093 = vmatprep.subr.bf16.mxu0 0
        %2094 = vmatpush1.bf16.msra.mxu0 0
        %2095 = vmatprep.subr.bf16.mxu0 0
        %2096 = vmatpush1.bf16.msra.mxu0 0
        %2097 = vmatprep.subr.bf16.mxu0 0
        %2098 = vmatpush1.bf16.msra.mxu0 %v2081
        %2099 = vmatprep.subr.bf16.mxu0 0
        %2100 = vmatpush2.bf16.msra.mxu0 0
        %2101 = vmatprep.subr.bf16.mxu0 0
        %2102 = vmatpush2.bf16.msra.mxu0 0
        %2103 = vmatprep.subr.bf16.mxu0 0
        %2104 = vmatpush2.bf16.msra.mxu0 0
        %2105 = vmatprep.subr.bf16.mxu0 0
        %2106 = vmatpush2.bf16.msra.mxu0 0
        %2107 = vmatprep.subr.bf16.mxu0 0
        %2108 = vmatpush2.bf16.msra.mxu0 0
        %2109 = vmatprep.subr.bf16.mxu0 0
        %2110 = vmatpush2.bf16.msra.mxu0 0
        %2111 = vmatprep.subr.bf16.mxu0 0
        %2112 = vmatpush2.bf16.msra.mxu0 0
        %2113 = vmatprep.subr.bf16.mxu0 0
        %2114 = vmatpush2.bf16.msra.mxu0 0
        %2115 = vmatprep.mubr.bf16.mxu0 0
        %2116 = vmatmul.mubr.bf16.gmra.mxu0 %v2075
        %v2117 = vpop.f32.mrf.mxu0
        %v2118 = vadd.f32 0.0, %v2117
        %v2119 = vpop.f32.mrf.mxu0
        %v2120 = vpop.f32.mrf.mxu0
        %v2121 = vadd.f32 0.0, %v2120
        %v2122 = vpop.f32.mrf.mxu0
        %2123 = vmatprep.mubr.bf16.mxu0 0
        %2124 = vmatmul.mubr.bf16.gmra.mxu0 %v2078
        %v2125 = vpop.f32.mrf.mxu0
        %v2126 = vadd.f32 0.0, %v2125
        %v2127 = vpop.f32.mrf.mxu0
        %v2128 = vpop.f32.mrf.mxu0
        %v2129 = vadd.f32 0.0, %v2128
        %v2130 = vpop.f32.mrf.mxu0
        %2131 = vdwg.mxu0
        %v2132 = vsel %vm629, %v1944, 0.0
        %v2133 = vsel %vm629, %v2002, 0.0
        %v2134 = vadd.f32 %v2132, %v2133
        %v2135 = vsel %vm629, %v2060, 0.0
        %v2136 = vadd.f32 %v2134, %v2135
        %v2137 = vsel %vm629, %v2118, 0.0
        %v2138 = vadd.f32 %v2136, %v2137
        %v2139 = vsel %vm629, %v1947, 0.0
        %v2140 = vsel %vm629, %v2005, 0.0
        %v2141 = vadd.f32 %v2139, %v2140
        %v2142 = vsel %vm629, %v2063, 0.0
        %v2143 = vadd.f32 %v2141, %v2142
        %v2144 = vsel %vm629, %v2121, 0.0
        %v2145 = vadd.f32 %v2143, %v2144
        %v2146 = vsel %vm629, %v1952, 0.0
        %v2147 = vsel %vm629, %v2010, 0.0
        %v2148 = vadd.f32 %v2146, %v2147
        %v2149 = vsel %vm629, %v2068, 0.0
        %v2150 = vadd.f32 %v2148, %v2149
        %v2151 = vsel %vm629, %v2126, 0.0
        %v2152 = vadd.f32 %v2150, %v2151
        %v2153 = vsel %vm629, %v1955, 0.0
        %v2154 = vsel %vm629, %v2013, 0.0
        %v2155 = vadd.f32 %v2153, %v2154
        %v2156 = vsel %vm629, %v2071, 0.0
        %v2157 = vadd.f32 %v2155, %v2156
        %v2158 = vsel %vm629, %v2129, 0.0
        %v2159 = vadd.f32 %v2157, %v2158
        %v2160 = vld [vmem:[%s8] sm:$0x1]
        %v2162 = vlaneseq
        %v2163 = vshrl.u32 %v2162, 7
        %v2164 = vsub.s32 0, %v2163
        %v2165 = vrot.slane %v2160, %v2164
        %v2167 = vadd.f32 %v2138, %v2165
        %v2168 = vadd.f32 %v2145, %v2165
        %v2169 = vadd.f32 %v2152, %v2165
        %v2170 = vadd.f32 %v2159, %v2165
        %v2171 = vadd.f32 %v2167, %v600
        %v2172 = vadd.f32 %v2168, %v601
        %v2173 = vadd.f32 %v2169, %v602
        %v2174 = vadd.f32 %v2170, %v603
        %v2175 = vld [vmem:[%s9] sm:$0x1]
        %v2176 = vld [vmem:[%s10] sm:$0x1]
        %v2177 = vsel %vm629, %v2171, 0.0
        %2178 = vadd.xlane.f32.xlu0 %v2177
        %v2179 = vpop.xlane.xlu0 %2178
        %v2180 = vsel %vm629, %v2172, 0.0
        %2181 = vadd.xlane.f32.xlu0 %v2180
        %v2182 = vpop.xlane.xlu0 %2181
        %v2183 = vsel %vm629, %v2173, 0.0
        %2184 = vadd.xlane.f32.xlu0 %v2183
        %v2185 = vpop.xlane.xlu0 %2184
        %v2186 = vsel %vm629, %v2174, 0.0
        %2187 = vadd.xlane.f32.xlu0 %v2186
        %v2188 = vpop.xlane.xlu0 %2187
        %v2189 = vrcp.pop 32.0
        %v2190 = vmul.f32 %v2179, %v2189
        %v2191 = vmul.f32 %v2182, %v2189
        %v2192 = vmul.f32 %v2185, %v2189
        %v2193 = vmul.f32 %v2188, %v2189
        %v2194 = vsub.f32 %v2171, %v2190
        %v2195 = vsub.f32 %v2172, %v2191
        %v2196 = vsub.f32 %v2173, %v2192
        %v2197 = vsub.f32 %v2174, %v2193
        %v2198 = vmul.f32 %v2194, %v2194
        %v2199 = vmul.f32 %v2195, %v2195
        %v2200 = vmul.f32 %v2196, %v2196
        %v2201 = vmul.f32 %v2197, %v2197
        %v2202 = vsel %vm629, %v2198, 0.0
        %2203 = vadd.xlane.f32.xlu0 %v2202
        %v2204 = vpop.xlane.xlu0 %2203
        %v2205 = vsel %vm629, %v2199, 0.0
        %2206 = vadd.xlane.f32.xlu0 %v2205
        %v2207 = vpop.xlane.xlu0 %2206
        %v2208 = vsel %vm629, %v2200, 0.0
        %2209 = vadd.xlane.f32.xlu0 %v2208
        %v2210 = vpop.xlane.xlu0 %2209
        %v2211 = vsel %vm629, %v2201, 0.0
        %2212 = vadd.xlane.f32.xlu0 %v2211
        %v2213 = vpop.xlane.xlu0 %2212
        %v2214 = vmul.f32 %v2204, %v2189
        %v2215 = vmul.f32 %v2207, %v2189
        %v2216 = vmul.f32 %v2210, %v2189
        %v2217 = vmul.f32 %v2213, %v2189
        %v2218 = vadd.f32 %v2214, 1e-06
        %v2219 = vadd.f32 %v2215, 1e-06
        %v2220 = vadd.f32 %v2216, 1e-06
        %v2221 = vadd.f32 %v2217, 1e-06
        %v2222 = vrsqrt.pop %v2218
        %v2223 = vrsqrt.pop %v2219
        %v2224 = vrsqrt.pop %v2220
        %v2225 = vrsqrt.pop %v2221
        %v2226 = vmul.f32 %v2194, %v2222
        %v2227 = vmul.f32 %v2195, %v2223
        %v2228 = vmul.f32 %v2196, %v2224
        %v2229 = vmul.f32 %v2197, %v2225
        %v2231 = vlaneseq
        %v2232 = vshrl.u32 %v2231, 7
        %v2233 = vsub.s32 0, %v2232
        %v2234 = vrot.slane %v2175, %v2233
        %v2236 = vmul.f32 %v2226, %v2234
        %v2237 = vmul.f32 %v2227, %v2234
        %v2238 = vmul.f32 %v2228, %v2234
        %v2239 = vmul.f32 %v2229, %v2234
        %v2241 = vlaneseq
        %v2242 = vshrl.u32 %v2241, 7
        %v2243 = vsub.s32 0, %v2242
        %v2244 = vrot.slane %v2176, %v2243
        %v2246 = vadd.f32 %v2236, %v2244
        %v2247 = vadd.f32 %v2237, %v2244
        %v2248 = vadd.f32 %v2238, %v2244
        %v2249 = vadd.f32 %v2239, %v2244
        %v2250 = vpack.c.bf16 %v2247, %v2246
        %v2251 = vpack.c.bf16 %v2249, %v2248
        %v2252 = vld [vmem:[#allocation7] sm:$0xf]
        %v2253 = vld [vmem:[#allocation7 + $0x4] sm:$0xf]
        %v2254 = vld [vmem:[#allocation7 + $0x8] sm:$0xf]
        %v2255 = vld [vmem:[#allocation7 + $0xc] sm:$0xf]
        %v2256 = vld [vmem:[%s12] sm:$0x1]
        %v2258 = vlaneseq
        %v2259 = vshrl.u32 %v2258, 7
        %v2260 = vsub.s32 0, %v2259
        %v2261 = vrot.slane %v2256, %v2260
        %v2267 = vunpack.c.l.b16 %v2252
        %v2268 = vunpack.c.l.b16 %v2253
        %v2269 = vunpack.c.l.b16 %v2254
        %v2270 = vunpack.c.l.b16 %v2255
        %v2271 = vpack.c.b16 %v2268, %v2267
        %v2272 = vpack.c.b16 %v2270, %v2269
        %v2276 = vsel %vm629, %v2250, 0
        %v2279 = vsel %vm629, %v2251, 0
        %2281 = vmatprep.subr.bf16.mxu0 0
        %2282 = vmatpush1.bf16.msra.mxu0 0
        %2283 = vmatprep.subr.bf16.mxu0 0
        %2284 = vmatpush1.bf16.msra.mxu0 0
        %2285 = vmatprep.subr.bf16.mxu0 0
        %2286 = vmatpush1.bf16.msra.mxu0 0
        %2287 = vmatprep.subr.bf16.mxu0 0
        %2288 = vmatpush1.bf16.msra.mxu0 0
        %2289 = vmatprep.subr.bf16.mxu0 0
        %2290 = vmatpush1.bf16.msra.mxu0 0
        %2291 = vmatprep.subr.bf16.mxu0 0
        %2292 = vmatpush1.bf16.msra.mxu0 0
        %2293 = vmatprep.subr.bf16.mxu0 0
        %2294 = vmatpush1.bf16.msra.mxu0 %v2272
        %2295 = vmatprep.subr.bf16.mxu0 0
        %2296 = vmatpush1.bf16.msra.mxu0 %v2271
        %2297 = vmatprep.subr.bf16.mxu0 0
        %2298 = vmatpush2.bf16.msra.mxu0 0
        %2299 = vmatprep.subr.bf16.mxu0 0
        %2300 = vmatpush2.bf16.msra.mxu0 0
        %2301 = vmatprep.subr.bf16.mxu0 0
        %2302 = vmatpush2.bf16.msra.mxu0 0
        %2303 = vmatprep.subr.bf16.mxu0 0
        %2304 = vmatpush2.bf16.msra.mxu0 0
        %2305 = vmatprep.subr.bf16.mxu0 0
        %2306 = vmatpush2.bf16.msra.mxu0 0
        %2307 = vmatprep.subr.bf16.mxu0 0
        %2308 = vmatpush2.bf16.msra.mxu0 0
        %2309 = vmatprep.subr.bf16.mxu0 0
        %2310 = vmatpush2.bf16.msra.mxu0 0
        %2311 = vmatprep.subr.bf16.mxu0 0
        %2312 = vmatpush2.bf16.msra.mxu0 0
        %2313 = vmatprep.mubr.bf16.mxu0 0
        %2314 = vmatmul.mubr.bf16.gmra.mxu0 %v2276
        %v2315 = vpop.f32.mrf.mxu0
        %v2316 = vadd.f32 %v2261, %v2315
        %v2317 = vpop.f32.mrf.mxu0
        %v2318 = vpop.f32.mrf.mxu0
        %v2319 = vadd.f32 %v2261, %v2318
        %v2320 = vpop.f32.mrf.mxu0
        %2321 = vmatprep.mubr.bf16.mxu0 0
        %2322 = vmatmul.mubr.bf16.gmra.mxu0 %v2279
        %v2323 = vpop.f32.mrf.mxu0
        %v2324 = vadd.f32 %v2261, %v2323
        %v2325 = vpop.f32.mrf.mxu0
        %v2326 = vpop.f32.mrf.mxu0
        %v2327 = vadd.f32 %v2261, %v2326
        %v2328 = vpop.f32.mrf.mxu0
        %2329 = vdwg.mxu0
        %v2330 = vmax.f32 %v2316, 0.0
        %v2331 = vmax.f32 %v2319, 0.0
        %v2332 = vmax.f32 %v2324, 0.0
        %v2333 = vmax.f32 %v2327, 0.0
        %v2334 = vpack.c.bf16 %v2331, %v2330
        %v2335 = vpack.c.bf16 %v2333, %v2332
        %v2336 = vld [vmem:[%s13] sm:$0xf]
        %v2337 = vld [vmem:[%s13 + $0x4] sm:$0xf]
        %v2338 = vld [vmem:[%s13 + $0x8] sm:$0xf]
        %v2339 = vld [vmem:[%s13 + $0xc] sm:$0xf]
        %v2340 = vld [vmem:[%s13 + $0x10] sm:$0xf]
        %v2341 = vld [vmem:[%s13 + $0x14] sm:$0xf]
        %v2342 = vld [vmem:[%s13 + $0x18] sm:$0xf]
        %v2343 = vld [vmem:[%s13 + $0x1c] sm:$0xf]
        %v2344 = vld [vmem:[%s14] sm:$0x1]
        %v2346 = vlaneseq
        %v2347 = vshrl.u32 %v2346, 7
        %v2348 = vsub.s32 0, %v2347
        %v2349 = vrot.slane %v2344, %v2348
        %v2359 = vunpack.c.l.b16 %v2336
        %v2360 = vunpack.c.l.b16 %v2337
        %v2361 = vunpack.c.l.b16 %v2338
        %v2362 = vunpack.c.l.b16 %v2339
        %v2363 = vunpack.c.l.b16 %v2340
        %v2364 = vunpack.c.l.b16 %v2341
        %v2365 = vunpack.c.l.b16 %v2342
        %v2366 = vunpack.c.l.b16 %v2343
        %v2367 = vpack.c.b16 %v2360, %v2359
        %v2368 = vpack.c.b16 %v2362, %v2361
        %v2369 = vpack.c.b16 %v2364, %v2363
        %v2370 = vpack.c.b16 %v2366, %v2365
        %vm2375 = vcmask 523264
        %v2377 = vsel %vm2375, %v2334, 0
        %v2380 = vsel %vm2375, %v2335, 0
        %2382 = vmatprep.subr.bf16.mxu0 0
        %2383 = vmatpush1.bf16.msra.mxu0 0
        %2384 = vmatprep.subr.bf16.mxu0 0
        %2385 = vmatpush1.bf16.msra.mxu0 0
        %2386 = vmatprep.subr.bf16.mxu0 0
        %2387 = vmatpush1.bf16.msra.mxu0 0
        %2388 = vmatprep.subr.bf16.mxu0 0
        %2389 = vmatpush1.bf16.msra.mxu0 0
        %2390 = vmatprep.subr.bf16.mxu0 0
        %2391 = vmatpush1.bf16.msra.mxu0 %v2370
        %2392 = vmatprep.subr.bf16.mxu0 0
        %2393 = vmatpush1.bf16.msra.mxu0 %v2369
        %2394 = vmatprep.subr.bf16.mxu0 0
        %2395 = vmatpush1.bf16.msra.mxu0 %v2368
        %2396 = vmatprep.subr.bf16.mxu0 0
        %2397 = vmatpush1.bf16.msra.mxu0 %v2367
        %2398 = vmatprep.subr.bf16.mxu0 0
        %2399 = vmatpush2.bf16.msra.mxu0 0
        %2400 = vmatprep.subr.bf16.mxu0 0
        %2401 = vmatpush2.bf16.msra.mxu0 0
        %2402 = vmatprep.subr.bf16.mxu0 0
        %2403 = vmatpush2.bf16.msra.mxu0 0
        %2404 = vmatprep.subr.bf16.mxu0 0
        %2405 = vmatpush2.bf16.msra.mxu0 0
        %2406 = vmatprep.subr.bf16.mxu0 0
        %2407 = vmatpush2.bf16.msra.mxu0 0
        %2408 = vmatprep.subr.bf16.mxu0 0
        %2409 = vmatpush2.bf16.msra.mxu0 0
        %2410 = vmatprep.subr.bf16.mxu0 0
        %2411 = vmatpush2.bf16.msra.mxu0 0
        %2412 = vmatprep.subr.bf16.mxu0 0
        %2413 = vmatpush2.bf16.msra.mxu0 0
        %2414 = vmatprep.mubr.bf16.mxu0 0
        %2415 = vmatmul.mubr.bf16.gmra.mxu0 %v2377
        %v2416 = vpop.f32.mrf.mxu0
        %v2417 = vadd.f32 %v2349, %v2416
        %v2418 = vpop.f32.mrf.mxu0
        %v2419 = vpop.f32.mrf.mxu0
        %v2420 = vadd.f32 %v2349, %v2419
        %v2421 = vpop.f32.mrf.mxu0
        %2422 = vmatprep.mubr.bf16.mxu0 0
        %2423 = vmatmul.mubr.bf16.gmra.mxu0 %v2380
        %v2424 = vpop.f32.mrf.mxu0
        %v2425 = vadd.f32 %v2349, %v2424
        %v2426 = vpop.f32.mrf.mxu0
        %v2427 = vpop.f32.mrf.mxu0
        %v2428 = vadd.f32 %v2349, %v2427
        %v2429 = vpop.f32.mrf.mxu0
        %2430 = vdwg.mxu0
        %v2431 = vadd.f32 %v2417, %v2246
        %v2432 = vadd.f32 %v2420, %v2247
        %v2433 = vadd.f32 %v2425, %v2248
        %v2434 = vadd.f32 %v2428, %v2249
        %v2435 = vld [vmem:[%s15] sm:$0x1]
        %v2436 = vld [vmem:[%s16] sm:$0x1]
        %v2437 = vsel %vm629, %v2431, 0.0
        %2438 = vadd.xlane.f32.xlu0 %v2437
        %v2439 = vpop.xlane.xlu0 %2438
        %v2440 = vsel %vm629, %v2432, 0.0
        %2441 = vadd.xlane.f32.xlu0 %v2440
        %v2442 = vpop.xlane.xlu0 %2441
        %v2443 = vsel %vm629, %v2433, 0.0
        %2444 = vadd.xlane.f32.xlu0 %v2443
        %v2445 = vpop.xlane.xlu0 %2444
        %v2446 = vsel %vm629, %v2434, 0.0
        %2447 = vadd.xlane.f32.xlu0 %v2446
        %v2448 = vpop.xlane.xlu0 %2447
        %v2449 = vmul.f32 %v2439, %v2189
        %v2450 = vmul.f32 %v2442, %v2189
        %v2451 = vmul.f32 %v2445, %v2189
        %v2452 = vmul.f32 %v2448, %v2189
        %v2453 = vsub.f32 %v2431, %v2449
        %v2454 = vsub.f32 %v2432, %v2450
        %v2455 = vsub.f32 %v2433, %v2451
        %v2456 = vsub.f32 %v2434, %v2452
        %v2457 = vmul.f32 %v2453, %v2453
        %v2458 = vmul.f32 %v2454, %v2454
        %v2459 = vmul.f32 %v2455, %v2455
        %v2460 = vmul.f32 %v2456, %v2456
        %v2461 = vsel %vm629, %v2457, 0.0
        %2462 = vadd.xlane.f32.xlu0 %v2461
        %v2463 = vpop.xlane.xlu0 %2462
        %v2464 = vsel %vm629, %v2458, 0.0
        %2465 = vadd.xlane.f32.xlu0 %v2464
        %v2466 = vpop.xlane.xlu0 %2465
        %v2467 = vsel %vm629, %v2459, 0.0
        %2468 = vadd.xlane.f32.xlu0 %v2467
        %v2469 = vpop.xlane.xlu0 %2468
        %v2470 = vsel %vm629, %v2460, 0.0
        %2471 = vadd.xlane.f32.xlu0 %v2470
        %v2472 = vpop.xlane.xlu0 %2471
        %v2473 = vmul.f32 %v2463, %v2189
        %v2474 = vmul.f32 %v2466, %v2189
        %v2475 = vmul.f32 %v2469, %v2189
        %v2476 = vmul.f32 %v2472, %v2189
        %v2477 = vadd.f32 %v2473, 1e-06
        %v2478 = vadd.f32 %v2474, 1e-06
        %v2479 = vadd.f32 %v2475, 1e-06
        %v2480 = vadd.f32 %v2476, 1e-06
        %v2481 = vrsqrt.pop %v2477
        %v2482 = vrsqrt.pop %v2478
        %v2483 = vrsqrt.pop %v2479
        %v2484 = vrsqrt.pop %v2480
        %v2485 = vmul.f32 %v2453, %v2481
        %v2486 = vmul.f32 %v2454, %v2482
        %v2487 = vmul.f32 %v2455, %v2483
        %v2488 = vmul.f32 %v2456, %v2484
        %v2490 = vlaneseq
        %v2491 = vshrl.u32 %v2490, 7
        %v2492 = vsub.s32 0, %v2491
        %v2493 = vrot.slane %v2435, %v2492
        %v2495 = vmul.f32 %v2485, %v2493
        %v2496 = vmul.f32 %v2486, %v2493
        %v2497 = vmul.f32 %v2487, %v2493
        %v2498 = vmul.f32 %v2488, %v2493
        %v2500 = vlaneseq
        %v2501 = vshrl.u32 %v2500, 7
        %v2502 = vsub.s32 0, %v2501
        %v2503 = vrot.slane %v2436, %v2502
        %v2505 = vadd.f32 %v2495, %v2503
        %v2506 = vadd.f32 %v2496, %v2503
        %v2507 = vadd.f32 %v2497, %v2503
        %v2508 = vadd.f32 %v2498, %v2503
        %2509 = vst.msk [vmem:[%s596] sm:$0xff] %vm629, %v2505
        %2510 = vst.msk [vmem:[%s596 + $0x8] sm:$0xff] %vm629, %v2506
        %2511 = vst.msk [vmem:[%s596 + $0x10] sm:$0xff] %vm629, %v2507
        %2512 = vst.msk [vmem:[%s596 + $0x18] sm:$0xff] %vm629, %v2508
        %s2513 = sand.u32 %s405, 1
        %s2514 = scalar_lea.sflag [#allocation4], %s2513
        %s2515 = sand.u32 %s405, 1
        %s2516 = smul.addr %s2515, 32
        %s2517 = scalar_lea.vmem [#allocation8], %s2516
        // Predicated region
        $region101: #{tpu_custom_call.1} parent=87 // pred_check
          %p2518 = pneg %p415
        $region102: #{tpu_custom_call.1} parent=87 // pred_check_branch
          %2520 = sbr.rel (%p2518) target = $region104
        $region103: #{tpu_custom_call.1} parent=87 // pred_region
          %s2521 = smul.u32 2, %s35
          %s2523 = ssub.s32 512, 512
          %2524 = vsyncadd %s2514, %s2523
          %s2525 = smul.addr %s2521, 2
          %s2526 = smul.addr %s2525, 128
          %s2527 = scalar_lea.hbm %s17, %s2526
          %s2528 = sshll.u32 %s2517, 4
          %s2529 = int_to_ptr.vmem [resolvable:$true] %s2528
          %2534 = dma.vmem_to_hbm [thread:$0]  %s2529, 512, %s2527, %s2514, 128, 128, 8
        $region104: #{tpu_custom_call.1} parent=87 // pred_fallthru
          _
      $region88: #{tpu_custom_call.1} parent=5 // pred_fallthru
        _
      %p2535 = scmp.le.s32.totalorder 2, %s30
      // Predicated region
      $region105: #{tpu_custom_call.1} parent=5 // pred_check
        %p2536 = pneg %p2535
      $region106: #{tpu_custom_call.1} parent=5 // pred_check_branch
        %2538 = sbr.rel (%p2536) target = $region108
      $region107: #{tpu_custom_call.1} parent=5 // pred_region
        %s2539 = ssub.s32 %s30, 2
        // Predicated region
        $region109: #{tpu_custom_call.1} parent=107 // pred_check
          %p2540 = pneg %p421
        $region110: #{tpu_custom_call.1} parent=107 // pred_check_branch
          %2542 = sbr.rel (%p2540) target = $region112
        $region111: #{tpu_custom_call.1} parent=107 // pred_region
          %s2543 = sand.u32 %s406, 1
          %s2544 = scalar_lea.sflag [#allocation4], %s2543
          %s2545 = sand.u32 %s406, 1
          %s2546 = smul.addr %s2545, 32
          %s2547 = scalar_lea.vmem [#allocation8], %s2546
          %2548 = dma.done %s2544, 512
        $region112: #{tpu_custom_call.1} parent=107 // pred_fallthru
          _
      $region108: #{tpu_custom_call.1} parent=5 // pred_fallthru
        _
    $region6: #{tpu_custom_call.1} parent=1 // loop_footer
      %s34 = sadd.s32 1, %s30
    $region7: #{tpu_custom_call.1} parent=1 // loop_footer_branch
      %29 = sbr.rel target = $region3
    $region8: #{tpu_custom_call.1} parent=1 // loop_exit
      _
    %2549 = vsyncpa [#allocation3], 1
    %s2550 = scalar_lea.sflag [#allocation3], 1
    %2551 = vsyncpa %s2550, 1
    %2552 = vsyncpa [#allocation6], 1
    %2553 = vsyncpa [#allocation4], 1
    %s2554 = scalar_lea.sflag [#allocation4], 1
    %2555 = vsyncpa %s2554, 1

</llo_original>
